<compile_context>
chip_gen: v5e
topology: v5e:2x2
jax: 0.10.0
libtpu: 0.0.40
codegen_flags: <defaults>
</compile_context>

<pallas_src>
import functools

import jax
import jax.numpy as jnp
from jax import lax
from jax.experimental import pallas as pl
from jax.experimental.pallas import tpu as pltpu


def _round_up(x, m):
    return (x + m - 1) // m * m


def _lstm_chunk_kernel(bmax_ref, len_ref, xg_ref, whh_ref,
                       out_ref, h_ref, c_ref, *, hp: int, t_chunk: int):
    """One grid step == one (batch block, time chunk) tile of the recurrence.

    bmax_ref : SMEM (nb,) int32       max seq length per batch block (prefetched)
    len_ref  : VMEM (bc, 1) int32     per-row sequence lengths
    xg_ref   : VMEM (bc, Tc, 4*hp)    precomputed x@W_ih^T + b, gate order (i,f,o,g)
    whh_ref  : VMEM (hp, 4*hp)        W_hh^T (lane-padded, gate order (i,f,o,g))
    out_ref  : VMEM (bc, Tc, hp)      per-step hidden states (zero past length)
    h_ref, c_ref : VMEM (bc, hp) f32  final states; constant block index along the
                                      time axis -> VMEM resident, used as carries.
    """
    bi = pl.program_id(0)
    ti = pl.program_id(1)
    t0 = ti * t_chunk

    @pl.when(ti == 0)
    def _init():
        h_ref[...] = jnp.zeros_like(h_ref)
        c_ref[...] = jnp.zeros_like(c_ref)

    max_len = bmax_ref[bi]

    @pl.when(t0 >= max_len)
    def _skip():
        # whole chunk lies past every sequence in this batch block
        out_ref[...] = jnp.zeros_like(out_ref)

    @pl.when(t0 < max_len)
    def _compute():
        lens = len_ref[...]            # (bc, 1) int32
        whh = whh_ref[...]             # (hp, 4hp), bf16 (or f32)
        h = h_ref[...]                 # (bc, hp) f32 carries, kept in vregs
        c = c_ref[...]
        # Fully unrolled recurrence over the chunk (equivalent to
        # lax.fori_loop(..., unroll=True), but with static indices so every
        # load / store is an unmasked, statically addressed full-lane access).
        for s in range(t_chunk):
            g = xg_ref[:, s, :] + jnp.dot(h.astype(whh.dtype), whh,
                                          preferred_element_type=jnp.float32)
            sig = jax.nn.sigmoid(g[:, :3 * hp])     # i, f, o in one EUP slab
            i_g = sig[:, :hp]
            f_g = sig[:, hp:2 * hp]
            o_g = sig[:, 2 * hp:3 * hp]
            g_g = jnp.tanh(g[:, 3 * hp:])
            c_new = f_g * c + i_g * g_g
            h_new = o_g * jnp.tanh(c_new)
            valid = (t0 + s) < lens                 # (bc, 1) -> broadcasts over hp
            h = jnp.where(valid, h_new, h)
            c = jnp.where(valid, c_new, c)
            out_ref[:, s, :] = jnp.where(valid, h_new, 0.0).astype(out_ref.dtype)
        h_ref[...] = h
        c_ref[...] = c


def _pack_gates(m, H, Hp):
    """m: (rows, 4H), columns in PyTorch gate order (i, f, g, o).
    Returns (rows, 4Hp): gate order (i, f, o, g), each gate zero-padded to Hp lanes."""
    i, f, g, o = (m[:, k * H:(k + 1) * H] for k in range(4))
    pad = ((0, 0), (0, Hp - H))
    return jnp.concatenate(
        [jnp.pad(i, pad), jnp.pad(f, pad), jnp.pad(o, pad), jnp.pad(g, pad)], axis=1)


def rnn_encoder_forward(x, seq_lengths, W_ih, W_hh, b_ih, b_hh, *,
                        matmul_dtype=jnp.bfloat16, t_chunk=None):
    """x: (B, T, D) f32 batch-first, seq_lengths: (B,) int.
    Returns (out (B,T,H), h (1,B,H), c (1,B,H)) as RnnEncoder.forward does
    (pool_strategy=None, bidirectional=False, n_layer=1, lstm)."""
    B, T, D = x.shape
    H = W_hh.shape[1]
    Hp = _round_up(H, 128)                       # lane-pad hidden dim

    # --- time chunking (amortize per-grid-step overhead) ----------------------
    if t_chunk is None:
        t_chunk = 32
    t_chunk = min(_round_up(t_chunk, 8), _round_up(T, 8))
    Tp = _round_up(T, t_chunk)
    nt = Tp // t_chunk

    # --- batch blocking: >=2 blocks lets v7x's two TensorCores split the batch -
    bc = B // 2 if (B % 16 == 0) else B
    nb = B // bc

    md = jnp.dtype(matmul_dtype)
    lens = seq_lengths.astype(jnp.int32).reshape(B, 1)
    block_max_len = jnp.max(lens.reshape(nb, bc), axis=1).astype(jnp.int32)   # (nb,)

    # --- weights: transpose once, reorder gates to (i,f,o,g), pad H -> Hp ------
    wih_t = _pack_gates(jnp.transpose(W_ih).astype(jnp.float32), H, Hp)       # (D, 4Hp)
    whh_t = _pack_gates(jnp.transpose(W_hh).astype(jnp.float32), H, Hp)       # (H, 4Hp)
    whh_t = jnp.pad(whh_t, ((0, Hp - H), (0, 0)))                             # (Hp, 4Hp)
    bias = _pack_gates((b_ih + b_hh).astype(jnp.float32).reshape(1, 4 * H), H, Hp)

    # --- hoisted, time-parallel input projection (one big MXU-friendly matmul) -
    x_p = x.astype(jnp.float32)
    if Tp != T:
        x_p = jnp.pad(x_p, ((0, 0), (0, Tp - T), (0, 0)))
    prec = lax.Precision.HIGHEST if md == jnp.float32 else lax.Precision.DEFAULT
    xg = jnp.einsum('btd,dg->btg', x_p.astype(md), wih_t.astype(md),
                    preferred_element_type=jnp.float32, precision=prec) + bias
    xg = xg.astype(md)                                                        # (B, Tp, 4Hp)
    whh_md = whh_t.astype(md)

    # --- VMEM budget (double-buffered streams + resident weights) --------------
    est = (2 * bc * t_chunk * 4 * Hp * md.itemsize       # xg blocks
           + 2 * bc * t_chunk * Hp * 4                   # out blocks
           + 2 * Hp * 4 * Hp * md.itemsize               # W_hh^T
           + 4 * bc * Hp * 4 + 4 * bc * 4)               # h, c, lens
    vmem_limit = int(min(60 * 2 ** 20, max(32 * 2 ** 20, 2 * est)))

    grid_spec = pltpu.PrefetchScalarGridSpec(
        num_scalar_prefetch=1,
        grid=(nb, nt),
        in_specs=[
            pl.BlockSpec((bc, 1), lambda b, t, bm: (b, 0)),                    # lens
            pl.BlockSpec((bc, t_chunk, 4 * Hp), lambda b, t, bm: (b, t, 0)),   # x@Wih+b
            pl.BlockSpec((Hp, 4 * Hp), lambda b, t, bm: (0, 0)),               # Whh^T
        ],
        out_specs=[
            pl.BlockSpec((bc, t_chunk, Hp), lambda b, t, bm: (b, t, 0)),       # out
            pl.BlockSpec((bc, Hp), lambda b, t, bm: (b, 0)),                   # h (carry)
            pl.BlockSpec((bc, Hp), lambda b, t, bm: (b, 0)),                   # c (carry)
        ],
    )

    out_p, h_p, c_p = pl.pallas_call(
        functools.partial(_lstm_chunk_kernel, hp=Hp, t_chunk=t_chunk),
        out_shape=(
            jax.ShapeDtypeStruct((B, Tp, Hp), jnp.float32),
            jax.ShapeDtypeStruct((B, Hp), jnp.float32),
            jax.ShapeDtypeStruct((B, Hp), jnp.float32),
        ),
        grid_spec=grid_spec,
        compiler_params=pltpu.CompilerParams(
            dimension_semantics=("parallel", "arbitrary"),   # batch || , time seq.
            vmem_limit_bytes=vmem_limit),
    )(block_max_len, lens, xg, whh_md)

    out = out_p[:, :T, :H]               # drop time / lane padding (no-op if aligned)
    return out, h_p[:, :H][None], c_p[:, :H][None]


def _reference_forward(x, seq_lengths, W_ih, W_hh, b_ih, b_hh):
    """Pure-JAX f32 reference (mirrors PyTorch packed-LSTM semantics)."""
    B, T, D = x.shape
    H = W_hh.shape[1]
    hi = lax.Precision.HIGHEST
    h = jnp.zeros((B, H), jnp.float32)
    c = jnp.zeros((B, H), jnp.float32)
    outs = []
    for t in range(T):
        gates = (jnp.dot(x[:, t], W_ih.T, precision=hi) + b_ih
                 + jnp.dot(h, W_hh.T, precision=hi) + b_hh)
        i_g = jax.nn.sigmoid(gates[:, :H])
        f_g = jax.nn.sigmoid(gates[:, H:2 * H])
        g_g = jnp.tanh(gates[:, 2 * H:3 * H])
        o_g = jax.nn.sigmoid(gates[:, 3 * H:])
        c_new = f_g * c + i_g * g_g
        h_new = o_g * jnp.tanh(c_new)
        valid = (t < seq_lengths)[:, None].astype(jnp.float32)
        h = valid * h_new + (1.0 - valid) * h
        c = valid * c_new + (1.0 - valid) * c
        outs.append(valid * h_new)
    return jnp.stack(outs, axis=1), h[None], c[None]


if __name__ == "__main__":
    # Small shapes consistent with the module: batch=2, seq=8, input_dim=16, rnn_dim=32.
    B, T, D, H = 2, 8, 16, 32

    key = jax.random.PRNGKey(0)
    kx, kwih, kwhh, kbih, kbhh = jax.random.split(key, 5)

    x = jax.random.normal(kx, (B, T, D), dtype=jnp.float32)
    # pack_padded_sequence default (enforce_sorted=True) => lengths descending.
    seq_lengths = jnp.array([8, 5], dtype=jnp.int32)

    scale = 1.0 / jnp.sqrt(jnp.float32(H))   # PyTorch-style uniform init scale
    W_ih = jax.random.uniform(kwih, (4 * H, D), minval=-scale, maxval=scale)
    W_hh = jax.random.uniform(kwhh, (4 * H, H), minval=-scale, maxval=scale)
    b_ih = jax.random.uniform(kbih, (4 * H,), minval=-scale, maxval=scale)
    b_hh = jax.random.uniform(kbhh, (4 * H,), minval=-scale, maxval=scale)

    # default path: bf16 matmuls, f32 state / accumulation
    out, h, c = rnn_encoder_forward(x, seq_lengths, W_ih, W_hh, b_ih, b_hh)
    jax.block_until_ready((out, h, c))

    out_ref, h_ref, c_ref = _reference_forward(x, seq_lengths, W_ih, W_hh, b_ih, b_hh)
    assert out.shape == (B, T, H) and h.shape == (1, B, H) and c.shape == (1, B, H)
    assert jnp.allclose(out, out_ref, atol=2e-2), "output mismatch (bf16 path)"
    assert jnp.allclose(h, h_ref, atol=2e-2), "h mismatch (bf16 path)"
    assert jnp.allclose(c, c_ref, atol=2e-2), "c mismatch (bf16 path)"

    # exactness of the masking / recurrence semantics in f32
    out32, h32, c32 = rnn_encoder_forward(x, seq_lengths, W_ih, W_hh, b_ih, b_hh,
                                          matmul_dtype=jnp.float32)
    jax.block_until_ready((out32, h32, c32))
    assert jnp.allclose(out32, out_ref, atol=1e-4), "output mismatch (f32 path)"
    assert jnp.allclose(h32, h_ref, atol=1e-4), "h mismatch (f32 path)"
    assert jnp.allclose(c32, c_ref, atol=1e-4), "c mismatch (f32 path)"

    # TODO(synk): bidirectional / multi-layer / GRU-RNN variants, pool_strategy,
    # reverse_input and user-provided (h, c) initial states are not exercised by
    # the default constructor and are not lowered here.

    print("KERNEL_OK")
</pallas_src>

<mosaic_0001>
module attributes {stable_mosaic.version = 11 : i64} {
  func.func @_lstm_chunk_kernel(%arg0: i32, %arg1: i32, %arg2: memref<1xi32, #tpu.memory_space<smem>>, %arg3: memref<2x1xi32, #tpu.memory_space<vmem>>, %arg4: memref<2x8x512xbf16, #tpu.memory_space<vmem>>, %arg5: memref<128x512xbf16, #tpu.memory_space<vmem>>, %arg6: memref<2x8x128xf32, #tpu.memory_space<vmem>>, %arg7: memref<2x128xf32, #tpu.memory_space<vmem>>, %arg8: memref<2x128xf32, #tpu.memory_space<vmem>>) attributes {dimension_semantics = [#tpu.dimension_semantics<parallel>, #tpu.dimension_semantics<arbitrary>], iteration_bounds = array<i64: 1, 1>, scalar_prefetch = 1 : i64, scratch_operands = 0 : i64, tpu.core_type = #tpu.core_type<tc>, window_params = [{transform_indices = @transform_0, window_bounds = array<i64: 2, 1>}, {transform_indices = @transform_1, window_bounds = array<i64: 2, 8, 512>}, {pipeline_mode = #tpu.pipeline_mode<synchronous>, transform_indices = @transform_2, window_bounds = array<i64: 128, 512>}, {transform_indices = @transform_3, window_bounds = array<i64: 2, 8, 128>}, {transform_indices = @transform_4, window_bounds = array<i64: 2, 128>}, {transform_indices = @transform_5, window_bounds = array<i64: 2, 128>}]} {
    %c8_i32 = arith.constant 8 : i32
    %0 = arith.muli %arg1, %c8_i32 : i32
    %c0_i32 = arith.constant 0 : i32
    %1 = arith.cmpi eq, %arg1, %c0_i32 : i32
    %2 = arith.extui %1 : i1 to i32
    %c0_i32_0 = arith.constant 0 : i32
    %3 = arith.cmpi ne, %2, %c0_i32_0 : i32
    scf.if %3 {
      %cst = arith.constant 0.000000e+00 : f32
      %12 = vector.broadcast %cst : f32 to vector<2x128xf32>
      %c0 = arith.constant 0 : index
      %c0_3 = arith.constant 0 : index
      %13 = vector.load %arg7[%c0, %c0_3] : memref<2x128xf32, #tpu.memory_space<vmem>>, vector<2x128xf32>
      tpu.vector_store %arg7[%c0, %c0_3], %12 {strides = array<i32>} : memref<2x128xf32, #tpu.memory_space<vmem>>, vector<2x128xf32>,
      %cst_4 = arith.constant 0.000000e+00 : f32
      %14 = vector.broadcast %cst_4 : f32 to vector<2x128xf32>
      %c0_5 = arith.constant 0 : index
      %c0_6 = arith.constant 0 : index
      %15 = vector.load %arg8[%c0_5, %c0_6] : memref<2x128xf32, #tpu.memory_space<vmem>>, vector<2x128xf32>
      tpu.vector_store %arg8[%c0_5, %c0_6], %14 {strides = array<i32>} : memref<2x128xf32, #tpu.memory_space<vmem>>, vector<2x128xf32>,
    } else {
    }
    %4 = arith.index_cast %arg0 : i32 to index
    %5 = memref.load %arg2[%4] : memref<1xi32, #tpu.memory_space<smem>>
    %6 = arith.cmpi sge, %0, %5 : i32
    %7 = arith.extui %6 : i1 to i32
    %c0_i32_1 = arith.constant 0 : i32
    %8 = arith.cmpi ne, %7, %c0_i32_1 : i32
    scf.if %8 {
      %cst = arith.constant 0.000000e+00 : f32
      %12 = vector.broadcast %cst : f32 to vector<2x8x128xf32>
      %c0 = arith.constant 0 : index
      %c0_3 = arith.constant 0 : index
      %c0_4 = arith.constant 0 : index
      %13 = vector.load %arg6[%c0, %c0_3, %c0_4] : memref<2x8x128xf32, #tpu.memory_space<vmem>>, vector<2x8x128xf32>
      tpu.vector_store %arg6[%c0, %c0_3, %c0_4], %12 {strides = array<i32>} : memref<2x8x128xf32, #tpu.memory_space<vmem>>, vector<2x8x128xf32>,
    } else {
    }
    %9 = arith.cmpi slt, %0, %5 : i32
    %10 = arith.extui %9 : i1 to i32
    %c0_i32_2 = arith.constant 0 : i32
    %11 = arith.cmpi ne, %10, %c0_i32_2 : i32
    scf.if %11 {
      %c0 = arith.constant 0 : index
      %c0_3 = arith.constant 0 : index
      %12 = vector.load %arg3[%c0, %c0_3] : memref<2x1xi32, #tpu.memory_space<vmem>>, vector<2x1xi32>
      %c0_4 = arith.constant 0 : index
      %c0_5 = arith.constant 0 : index
      %13 = vector.load %arg5[%c0_4, %c0_5] : memref<128x512xbf16, #tpu.memory_space<vmem>>, vector<128x512xbf16>
      %c0_6 = arith.constant 0 : index
      %c0_7 = arith.constant 0 : index
      %14 = vector.load %arg7[%c0_6, %c0_7] : memref<2x128xf32, #tpu.memory_space<vmem>>, vector<2x128xf32>
      %c0_8 = arith.constant 0 : index
      %c0_9 = arith.constant 0 : index
      %15 = vector.load %arg8[%c0_8, %c0_9] : memref<2x128xf32, #tpu.memory_space<vmem>>, vector<2x128xf32>
      %c0_10 = arith.constant 0 : index
      %c0_11 = arith.constant 0 : index
      %c0_12 = arith.constant 0 : index
      %16 = vector.load %arg4[%c0_10, %c0_11, %c0_12] : memref<2x8x512xbf16, #tpu.memory_space<vmem>>, vector<2x1x512xbf16>
      %17 = vector.shape_cast %16 : vector<2x1x512xbf16> to vector<2x512xbf16>
      %18 = arith.truncf %14 : vector<2x128xf32> to vector<2x128xbf16>
      %cst = arith.constant dense<0.000000e+00> : vector<2x512xf32>
      %19 = tpu.matmul %18, %13, %cst {dimension_numbers = #tpu.dot_dimension_numbers<[1], [0], [0], [1], [0, 0, 1, 1], [], []>} : vector<2x128xbf16>, vector<128x512xbf16>, vector<2x512xf32> -> vector<2x512xf32>
      %20 = arith.extf %17 : vector<2x512xbf16> to vector<2x512xf32>
      %21 = arith.addf %20, %19 : vector<2x512xf32>
      %22 = vector.extract_strided_slice %21 {offsets = [0, 0], sizes = [2, 384], strides = [1, 1]} : vector<2x512xf32> to vector<2x384xf32>
      %23 = arith.negf %22 : vector<2x384xf32>
      %24 = math.exp %23 : vector<2x384xf32>
      %cst_13 = arith.constant 1.000000e+00 : f32
      %25 = vector.broadcast %cst_13 : f32 to vector<2x384xf32>
      %26 = arith.addf %25, %24 : vector<2x384xf32>
      %27 = arith.divf %25, %26 : vector<2x384xf32>
      %28 = vector.extract_strided_slice %27 {offsets = [0, 0], sizes = [2, 128], strides = [1, 1]} : vector<2x384xf32> to vector<2x128xf32>
      %29 = vector.extract_strided_slice %27 {offsets = [0, 128], sizes = [2, 128], strides = [1, 1]} : vector<2x384xf32> to vector<2x128xf32>
      %30 = vector.extract_strided_slice %27 {offsets = [0, 256], sizes = [2, 128], strides = [1, 1]} : vector<2x384xf32> to vector<2x128xf32>
      %31 = vector.extract_strided_slice %21 {offsets = [0, 384], sizes = [2, 128], strides = [1, 1]} : vector<2x512xf32> to vector<2x128xf32>
      %32 = math.tanh %31 : vector<2x128xf32>
      %33 = arith.mulf %29, %15 : vector<2x128xf32>
      %34 = arith.mulf %28, %32 : vector<2x128xf32>
      %35 = arith.addf %33, %34 : vector<2x128xf32>
      %36 = math.tanh %35 : vector<2x128xf32>
      %37 = arith.mulf %30, %36 : vector<2x128xf32>
      %c0_i32_14 = arith.constant 0 : i32
      %38 = arith.addi %0, %c0_i32_14 : i32
      %39 = vector.broadcast %38 : i32 to vector<2x1xi32>
      %40 = arith.cmpi slt, %39, %12 : vector<2x1xi32>
      %41 = vector.shape_cast %40 : vector<2x1xi1> to vector<2x1xi1>
      %42 = vector.broadcast %41 : vector<2x1xi1> to vector<2x128xi1>
      %43 = arith.select %42, %37, %14 : vector<2x128xi1>, vector<2x128xf32>
      %44 = vector.shape_cast %40 : vector<2x1xi1> to vector<2x1xi1>
      %45 = vector.broadcast %44 : vector<2x1xi1> to vector<2x128xi1>
      %46 = arith.select %45, %35, %15 : vector<2x128xi1>, vector<2x128xf32>
      %cst_15 = arith.constant 0.000000e+00 : f32
      %47 = vector.shape_cast %40 : vector<2x1xi1> to vector<2x1xi1>
      %48 = vector.broadcast %47 : vector<2x1xi1> to vector<2x128xi1>
      %49 = vector.broadcast %cst_15 : f32 to vector<2x128xf32>
      %50 = arith.select %48, %37, %49 : vector<2x128xi1>, vector<2x128xf32>
      %c0_16 = arith.constant 0 : index
      %c0_17 = arith.constant 0 : index
      %c0_18 = arith.constant 0 : index
      %51 = vector.load %arg6[%c0_16, %c0_17, %c0_18] : memref<2x8x128xf32, #tpu.memory_space<vmem>>, vector<2x1x128xf32>
      %52 = vector.shape_cast %51 : vector<2x1x128xf32> to vector<2x128xf32>
      %53 = vector.shape_cast %50 : vector<2x128xf32> to vector<2x1x128xf32>
      tpu.vector_store %arg6[%c0_16, %c0_17, %c0_18], %53 {strides = array<i32>} : memref<2x8x128xf32, #tpu.memory_space<vmem>>, vector<2x1x128xf32>,
      %c0_19 = arith.constant 0 : index
      %c1 = arith.constant 1 : index
      %c0_20 = arith.constant 0 : index
      %54 = vector.load %arg4[%c0_19, %c1, %c0_20] : memref<2x8x512xbf16, #tpu.memory_space<vmem>>, vector<2x1x512xbf16>
      %55 = vector.shape_cast %54 : vector<2x1x512xbf16> to vector<2x512xbf16>
      %56 = arith.truncf %43 : vector<2x128xf32> to vector<2x128xbf16>
      %cst_21 = arith.constant dense<0.000000e+00> : vector<2x512xf32>
      %57 = tpu.matmul %56, %13, %cst_21 {dimension_numbers = #tpu.dot_dimension_numbers<[1], [0], [0], [1], [0, 0, 1, 1], [], []>} : vector<2x128xbf16>, vector<128x512xbf16>, vector<2x512xf32> -> vector<2x512xf32>
      %58 = arith.extf %55 : vector<2x512xbf16> to vector<2x512xf32>
      %59 = arith.addf %58, %57 : vector<2x512xf32>
      %60 = vector.extract_strided_slice %59 {offsets = [0, 0], sizes = [2, 384], strides = [1, 1]} : vector<2x512xf32> to vector<2x384xf32>
      %61 = arith.negf %60 : vector<2x384xf32>
      %62 = math.exp %61 : vector<2x384xf32>
      %cst_22 = arith.constant 1.000000e+00 : f32
      %63 = vector.broadcast %cst_22 : f32 to vector<2x384xf32>
      %64 = arith.addf %63, %62 : vector<2x384xf32>
      %65 = arith.divf %63, %64 : vector<2x384xf32>
      %66 = vector.extract_strided_slice %65 {offsets = [0, 0], sizes = [2, 128], strides = [1, 1]} : vector<2x384xf32> to vector<2x128xf32>
      %67 = vector.extract_strided_slice %65 {offsets = [0, 128], sizes = [2, 128], strides = [1, 1]} : vector<2x384xf32> to vector<2x128xf32>
      %68 = vector.extract_strided_slice %65 {offsets = [0, 256], sizes = [2, 128], strides = [1, 1]} : vector<2x384xf32> to vector<2x128xf32>
      %69 = vector.extract_strided_slice %59 {offsets = [0, 384], sizes = [2, 128], strides = [1, 1]} : vector<2x512xf32> to vector<2x128xf32>
      %70 = math.tanh %69 : vector<2x128xf32>
      %71 = arith.mulf %67, %46 : vector<2x128xf32>
      %72 = arith.mulf %66, %70 : vector<2x128xf32>
      %73 = arith.addf %71, %72 : vector<2x128xf32>
      %74 = math.tanh %73 : vector<2x128xf32>
      %75 = arith.mulf %68, %74 : vector<2x128xf32>
      %c1_i32 = arith.constant 1 : i32
      %76 = arith.addi %0, %c1_i32 : i32
      %77 = vector.broadcast %76 : i32 to vector<2x1xi32>
      %78 = arith.cmpi slt, %77, %12 : vector<2x1xi32>
      %79 = vector.shape_cast %78 : vector<2x1xi1> to vector<2x1xi1>
      %80 = vector.broadcast %79 : vector<2x1xi1> to vector<2x128xi1>
      %81 = arith.select %80, %75, %43 : vector<2x128xi1>, vector<2x128xf32>
      %82 = vector.shape_cast %78 : vector<2x1xi1> to vector<2x1xi1>
      %83 = vector.broadcast %82 : vector<2x1xi1> to vector<2x128xi1>
      %84 = arith.select %83, %73, %46 : vector<2x128xi1>, vector<2x128xf32>
      %cst_23 = arith.constant 0.000000e+00 : f32
      %85 = vector.shape_cast %78 : vector<2x1xi1> to vector<2x1xi1>
      %86 = vector.broadcast %85 : vector<2x1xi1> to vector<2x128xi1>
      %87 = vector.broadcast %cst_23 : f32 to vector<2x128xf32>
      %88 = arith.select %86, %75, %87 : vector<2x128xi1>, vector<2x128xf32>
      %c0_24 = arith.constant 0 : index
      %c1_25 = arith.constant 1 : index
      %c0_26 = arith.constant 0 : index
      %89 = vector.load %arg6[%c0_24, %c1_25, %c0_26] : memref<2x8x128xf32, #tpu.memory_space<vmem>>, vector<2x1x128xf32>
      %90 = vector.shape_cast %89 : vector<2x1x128xf32> to vector<2x128xf32>
      %91 = vector.shape_cast %88 : vector<2x128xf32> to vector<2x1x128xf32>
      tpu.vector_store %arg6[%c0_24, %c1_25, %c0_26], %91 {strides = array<i32>} : memref<2x8x128xf32, #tpu.memory_space<vmem>>, vector<2x1x128xf32>,
      %c0_27 = arith.constant 0 : index
      %c2 = arith.constant 2 : index
      %c0_28 = arith.constant 0 : index
      %92 = vector.load %arg4[%c0_27, %c2, %c0_28] : memref<2x8x512xbf16, #tpu.memory_space<vmem>>, vector<2x1x512xbf16>
      %93 = vector.shape_cast %92 : vector<2x1x512xbf16> to vector<2x512xbf16>
      %94 = arith.truncf %81 : vector<2x128xf32> to vector<2x128xbf16>
      %cst_29 = arith.constant dense<0.000000e+00> : vector<2x512xf32>
      %95 = tpu.matmul %94, %13, %cst_29 {dimension_numbers = #tpu.dot_dimension_numbers<[1], [0], [0], [1], [0, 0, 1, 1], [], []>} : vector<2x128xbf16>, vector<128x512xbf16>, vector<2x512xf32> -> vector<2x512xf32>
      %96 = arith.extf %93 : vector<2x512xbf16> to vector<2x512xf32>
      %97 = arith.addf %96, %95 : vector<2x512xf32>
      %98 = vector.extract_strided_slice %97 {offsets = [0, 0], sizes = [2, 384], strides = [1, 1]} : vector<2x512xf32> to vector<2x384xf32>
      %99 = arith.negf %98 : vector<2x384xf32>
      %100 = math.exp %99 : vector<2x384xf32>
      %cst_30 = arith.constant 1.000000e+00 : f32
      %101 = vector.broadcast %cst_30 : f32 to vector<2x384xf32>
      %102 = arith.addf %101, %100 : vector<2x384xf32>
      %103 = arith.divf %101, %102 : vector<2x384xf32>
      %104 = vector.extract_strided_slice %103 {offsets = [0, 0], sizes = [2, 128], strides = [1, 1]} : vector<2x384xf32> to vector<2x128xf32>
      %105 = vector.extract_strided_slice %103 {offsets = [0, 128], sizes = [2, 128], strides = [1, 1]} : vector<2x384xf32> to vector<2x128xf32>
      %106 = vector.extract_strided_slice %103 {offsets = [0, 256], sizes = [2, 128], strides = [1, 1]} : vector<2x384xf32> to vector<2x128xf32>
      %107 = vector.extract_strided_slice %97 {offsets = [0, 384], sizes = [2, 128], strides = [1, 1]} : vector<2x512xf32> to vector<2x128xf32>
      %108 = math.tanh %107 : vector<2x128xf32>
      %109 = arith.mulf %105, %84 : vector<2x128xf32>
      %110 = arith.mulf %104, %108 : vector<2x128xf32>
      %111 = arith.addf %109, %110 : vector<2x128xf32>
      %112 = math.tanh %111 : vector<2x128xf32>
      %113 = arith.mulf %106, %112 : vector<2x128xf32>
      %c2_i32 = arith.constant 2 : i32
      %114 = arith.addi %0, %c2_i32 : i32
      %115 = vector.broadcast %114 : i32 to vector<2x1xi32>
      %116 = arith.cmpi slt, %115, %12 : vector<2x1xi32>
      %117 = vector.shape_cast %116 : vector<2x1xi1> to vector<2x1xi1>
      %118 = vector.broadcast %117 : vector<2x1xi1> to vector<2x128xi1>
      %119 = arith.select %118, %113, %81 : vector<2x128xi1>, vector<2x128xf32>
      %120 = vector.shape_cast %116 : vector<2x1xi1> to vector<2x1xi1>
      %121 = vector.broadcast %120 : vector<2x1xi1> to vector<2x128xi1>
      %122 = arith.select %121, %111, %84 : vector<2x128xi1>, vector<2x128xf32>
      %cst_31 = arith.constant 0.000000e+00 : f32
      %123 = vector.shape_cast %116 : vector<2x1xi1> to vector<2x1xi1>
      %124 = vector.broadcast %123 : vector<2x1xi1> to vector<2x128xi1>
      %125 = vector.broadcast %cst_31 : f32 to vector<2x128xf32>
      %126 = arith.select %124, %113, %125 : vector<2x128xi1>, vector<2x128xf32>
      %c0_32 = arith.constant 0 : index
      %c2_33 = arith.constant 2 : index
      %c0_34 = arith.constant 0 : index
      %127 = vector.load %arg6[%c0_32, %c2_33, %c0_34] : memref<2x8x128xf32, #tpu.memory_space<vmem>>, vector<2x1x128xf32>
      %128 = vector.shape_cast %127 : vector<2x1x128xf32> to vector<2x128xf32>
      %129 = vector.shape_cast %126 : vector<2x128xf32> to vector<2x1x128xf32>
      tpu.vector_store %arg6[%c0_32, %c2_33, %c0_34], %129 {strides = array<i32>} : memref<2x8x128xf32, #tpu.memory_space<vmem>>, vector<2x1x128xf32>,
      %c0_35 = arith.constant 0 : index
      %c3 = arith.constant 3 : index
      %c0_36 = arith.constant 0 : index
      %130 = vector.load %arg4[%c0_35, %c3, %c0_36] : memref<2x8x512xbf16, #tpu.memory_space<vmem>>, vector<2x1x512xbf16>
      %131 = vector.shape_cast %130 : vector<2x1x512xbf16> to vector<2x512xbf16>
      %132 = arith.truncf %119 : vector<2x128xf32> to vector<2x128xbf16>
      %cst_37 = arith.constant dense<0.000000e+00> : vector<2x512xf32>
      %133 = tpu.matmul %132, %13, %cst_37 {dimension_numbers = #tpu.dot_dimension_numbers<[1], [0], [0], [1], [0, 0, 1, 1], [], []>} : vector<2x128xbf16>, vector<128x512xbf16>, vector<2x512xf32> -> vector<2x512xf32>
      %134 = arith.extf %131 : vector<2x512xbf16> to vector<2x512xf32>
      %135 = arith.addf %134, %133 : vector<2x512xf32>
      %136 = vector.extract_strided_slice %135 {offsets = [0, 0], sizes = [2, 384], strides = [1, 1]} : vector<2x512xf32> to vector<2x384xf32>
      %137 = arith.negf %136 : vector<2x384xf32>
      %138 = math.exp %137 : vector<2x384xf32>
      %cst_38 = arith.constant 1.000000e+00 : f32
      %139 = vector.broadcast %cst_38 : f32 to vector<2x384xf32>
      %140 = arith.addf %139, %138 : vector<2x384xf32>
      %141 = arith.divf %139, %140 : vector<2x384xf32>
      %142 = vector.extract_strided_slice %141 {offsets = [0, 0], sizes = [2, 128], strides = [1, 1]} : vector<2x384xf32> to vector<2x128xf32>
      %143 = vector.extract_strided_slice %141 {offsets = [0, 128], sizes = [2, 128], strides = [1, 1]} : vector<2x384xf32> to vector<2x128xf32>
      %144 = vector.extract_strided_slice %141 {offsets = [0, 256], sizes = [2, 128], strides = [1, 1]} : vector<2x384xf32> to vector<2x128xf32>
      %145 = vector.extract_strided_slice %135 {offsets = [0, 384], sizes = [2, 128], strides = [1, 1]} : vector<2x512xf32> to vector<2x128xf32>
      %146 = math.tanh %145 : vector<2x128xf32>
      %147 = arith.mulf %143, %122 : vector<2x128xf32>
      %148 = arith.mulf %142, %146 : vector<2x128xf32>
      %149 = arith.addf %147, %148 : vector<2x128xf32>
      %150 = math.tanh %149 : vector<2x128xf32>
      %151 = arith.mulf %144, %150 : vector<2x128xf32>
      %c3_i32 = arith.constant 3 : i32
      %152 = arith.addi %0, %c3_i32 : i32
      %153 = vector.broadcast %152 : i32 to vector<2x1xi32>
      %154 = arith.cmpi slt, %153, %12 : vector<2x1xi32>
      %155 = vector.shape_cast %154 : vector<2x1xi1> to vector<2x1xi1>
      %156 = vector.broadcast %155 : vector<2x1xi1> to vector<2x128xi1>
      %157 = arith.select %156, %151, %119 : vector<2x128xi1>, vector<2x128xf32>
      %158 = vector.shape_cast %154 : vector<2x1xi1> to vector<2x1xi1>
      %159 = vector.broadcast %158 : vector<2x1xi1> to vector<2x128xi1>
      %160 = arith.select %159, %149, %122 : vector<2x128xi1>, vector<2x128xf32>
      %cst_39 = arith.constant 0.000000e+00 : f32
      %161 = vector.shape_cast %154 : vector<2x1xi1> to vector<2x1xi1>
      %162 = vector.broadcast %161 : vector<2x1xi1> to vector<2x128xi1>
      %163 = vector.broadcast %cst_39 : f32 to vector<2x128xf32>
      %164 = arith.select %162, %151, %163 : vector<2x128xi1>, vector<2x128xf32>
      %c0_40 = arith.constant 0 : index
      %c3_41 = arith.constant 3 : index
      %c0_42 = arith.constant 0 : index
      %165 = vector.load %arg6[%c0_40, %c3_41, %c0_42] : memref<2x8x128xf32, #tpu.memory_space<vmem>>, vector<2x1x128xf32>
      %166 = vector.shape_cast %165 : vector<2x1x128xf32> to vector<2x128xf32>
      %167 = vector.shape_cast %164 : vector<2x128xf32> to vector<2x1x128xf32>
      tpu.vector_store %arg6[%c0_40, %c3_41, %c0_42], %167 {strides = array<i32>} : memref<2x8x128xf32, #tpu.memory_space<vmem>>, vector<2x1x128xf32>,
      %c0_43 = arith.constant 0 : index
      %c4 = arith.constant 4 : index
      %c0_44 = arith.constant 0 : index
      %168 = vector.load %arg4[%c0_43, %c4, %c0_44] : memref<2x8x512xbf16, #tpu.memory_space<vmem>>, vector<2x1x512xbf16>
      %169 = vector.shape_cast %168 : vector<2x1x512xbf16> to vector<2x512xbf16>
      %170 = arith.truncf %157 : vector<2x128xf32> to vector<2x128xbf16>
      %cst_45 = arith.constant dense<0.000000e+00> : vector<2x512xf32>
      %171 = tpu.matmul %170, %13, %cst_45 {dimension_numbers = #tpu.dot_dimension_numbers<[1], [0], [0], [1], [0, 0, 1, 1], [], []>} : vector<2x128xbf16>, vector<128x512xbf16>, vector<2x512xf32> -> vector<2x512xf32>
      %172 = arith.extf %169 : vector<2x512xbf16> to vector<2x512xf32>
      %173 = arith.addf %172, %171 : vector<2x512xf32>
      %174 = vector.extract_strided_slice %173 {offsets = [0, 0], sizes = [2, 384], strides = [1, 1]} : vector<2x512xf32> to vector<2x384xf32>
      %175 = arith.negf %174 : vector<2x384xf32>
      %176 = math.exp %175 : vector<2x384xf32>
      %cst_46 = arith.constant 1.000000e+00 : f32
      %177 = vector.broadcast %cst_46 : f32 to vector<2x384xf32>
      %178 = arith.addf %177, %176 : vector<2x384xf32>
      %179 = arith.divf %177, %178 : vector<2x384xf32>
      %180 = vector.extract_strided_slice %179 {offsets = [0, 0], sizes = [2, 128], strides = [1, 1]} : vector<2x384xf32> to vector<2x128xf32>
      %181 = vector.extract_strided_slice %179 {offsets = [0, 128], sizes = [2, 128], strides = [1, 1]} : vector<2x384xf32> to vector<2x128xf32>
      %182 = vector.extract_strided_slice %179 {offsets = [0, 256], sizes = [2, 128], strides = [1, 1]} : vector<2x384xf32> to vector<2x128xf32>
      %183 = vector.extract_strided_slice %173 {offsets = [0, 384], sizes = [2, 128], strides = [1, 1]} : vector<2x512xf32> to vector<2x128xf32>
      %184 = math.tanh %183 : vector<2x128xf32>
      %185 = arith.mulf %181, %160 : vector<2x128xf32>
      %186 = arith.mulf %180, %184 : vector<2x128xf32>
      %187 = arith.addf %185, %186 : vector<2x128xf32>
      %188 = math.tanh %187 : vector<2x128xf32>
      %189 = arith.mulf %182, %188 : vector<2x128xf32>
      %c4_i32 = arith.constant 4 : i32
      %190 = arith.addi %0, %c4_i32 : i32
      %191 = vector.broadcast %190 : i32 to vector<2x1xi32>
      %192 = arith.cmpi slt, %191, %12 : vector<2x1xi32>
      %193 = vector.shape_cast %192 : vector<2x1xi1> to vector<2x1xi1>
      %194 = vector.broadcast %193 : vector<2x1xi1> to vector<2x128xi1>
      %195 = arith.select %194, %189, %157 : vector<2x128xi1>, vector<2x128xf32>
      %196 = vector.shape_cast %192 : vector<2x1xi1> to vector<2x1xi1>
      %197 = vector.broadcast %196 : vector<2x1xi1> to vector<2x128xi1>
      %198 = arith.select %197, %187, %160 : vector<2x128xi1>, vector<2x128xf32>
      %cst_47 = arith.constant 0.000000e+00 : f32
      %199 = vector.shape_cast %192 : vector<2x1xi1> to vector<2x1xi1>
      %200 = vector.broadcast %199 : vector<2x1xi1> to vector<2x128xi1>
      %201 = vector.broadcast %cst_47 : f32 to vector<2x128xf32>
      %202 = arith.select %200, %189, %201 : vector<2x128xi1>, vector<2x128xf32>
      %c0_48 = arith.constant 0 : index
      %c4_49 = arith.constant 4 : index
      %c0_50 = arith.constant 0 : index
      %203 = vector.load %arg6[%c0_48, %c4_49, %c0_50] : memref<2x8x128xf32, #tpu.memory_space<vmem>>, vector<2x1x128xf32>
      %204 = vector.shape_cast %203 : vector<2x1x128xf32> to vector<2x128xf32>
      %205 = vector.shape_cast %202 : vector<2x128xf32> to vector<2x1x128xf32>
      tpu.vector_store %arg6[%c0_48, %c4_49, %c0_50], %205 {strides = array<i32>} : memref<2x8x128xf32, #tpu.memory_space<vmem>>, vector<2x1x128xf32>,
      %c0_51 = arith.constant 0 : index
      %c5 = arith.constant 5 : index
      %c0_52 = arith.constant 0 : index
      %206 = vector.load %arg4[%c0_51, %c5, %c0_52] : memref<2x8x512xbf16, #tpu.memory_space<vmem>>, vector<2x1x512xbf16>
      %207 = vector.shape_cast %206 : vector<2x1x512xbf16> to vector<2x512xbf16>
      %208 = arith.truncf %195 : vector<2x128xf32> to vector<2x128xbf16>
      %cst_53 = arith.constant dense<0.000000e+00> : vector<2x512xf32>
      %209 = tpu.matmul %208, %13, %cst_53 {dimension_numbers = #tpu.dot_dimension_numbers<[1], [0], [0], [1], [0, 0, 1, 1], [], []>} : vector<2x128xbf16>, vector<128x512xbf16>, vector<2x512xf32> -> vector<2x512xf32>
      %210 = arith.extf %207 : vector<2x512xbf16> to vector<2x512xf32>
      %211 = arith.addf %210, %209 : vector<2x512xf32>
      %212 = vector.extract_strided_slice %211 {offsets = [0, 0], sizes = [2, 384], strides = [1, 1]} : vector<2x512xf32> to vector<2x384xf32>
      %213 = arith.negf %212 : vector<2x384xf32>
      %214 = math.exp %213 : vector<2x384xf32>
      %cst_54 = arith.constant 1.000000e+00 : f32
      %215 = vector.broadcast %cst_54 : f32 to vector<2x384xf32>
      %216 = arith.addf %215, %214 : vector<2x384xf32>
      %217 = arith.divf %215, %216 : vector<2x384xf32>
      %218 = vector.extract_strided_slice %217 {offsets = [0, 0], sizes = [2, 128], strides = [1, 1]} : vector<2x384xf32> to vector<2x128xf32>
      %219 = vector.extract_strided_slice %217 {offsets = [0, 128], sizes = [2, 128], strides = [1, 1]} : vector<2x384xf32> to vector<2x128xf32>
      %220 = vector.extract_strided_slice %217 {offsets = [0, 256], sizes = [2, 128], strides = [1, 1]} : vector<2x384xf32> to vector<2x128xf32>
      %221 = vector.extract_strided_slice %211 {offsets = [0, 384], sizes = [2, 128], strides = [1, 1]} : vector<2x512xf32> to vector<2x128xf32>
      %222 = math.tanh %221 : vector<2x128xf32>
      %223 = arith.mulf %219, %198 : vector<2x128xf32>
      %224 = arith.mulf %218, %222 : vector<2x128xf32>
      %225 = arith.addf %223, %224 : vector<2x128xf32>
      %226 = math.tanh %225 : vector<2x128xf32>
      %227 = arith.mulf %220, %226 : vector<2x128xf32>
      %c5_i32 = arith.constant 5 : i32
      %228 = arith.addi %0, %c5_i32 : i32
      %229 = vector.broadcast %228 : i32 to vector<2x1xi32>
      %230 = arith.cmpi slt, %229, %12 : vector<2x1xi32>
      %231 = vector.shape_cast %230 : vector<2x1xi1> to vector<2x1xi1>
      %232 = vector.broadcast %231 : vector<2x1xi1> to vector<2x128xi1>
      %233 = arith.select %232, %227, %195 : vector<2x128xi1>, vector<2x128xf32>
      %234 = vector.shape_cast %230 : vector<2x1xi1> to vector<2x1xi1>
      %235 = vector.broadcast %234 : vector<2x1xi1> to vector<2x128xi1>
      %236 = arith.select %235, %225, %198 : vector<2x128xi1>, vector<2x128xf32>
      %cst_55 = arith.constant 0.000000e+00 : f32
      %237 = vector.shape_cast %230 : vector<2x1xi1> to vector<2x1xi1>
      %238 = vector.broadcast %237 : vector<2x1xi1> to vector<2x128xi1>
      %239 = vector.broadcast %cst_55 : f32 to vector<2x128xf32>
      %240 = arith.select %238, %227, %239 : vector<2x128xi1>, vector<2x128xf32>
      %c0_56 = arith.constant 0 : index
      %c5_57 = arith.constant 5 : index
      %c0_58 = arith.constant 0 : index
      %241 = vector.load %arg6[%c0_56, %c5_57, %c0_58] : memref<2x8x128xf32, #tpu.memory_space<vmem>>, vector<2x1x128xf32>
      %242 = vector.shape_cast %241 : vector<2x1x128xf32> to vector<2x128xf32>
      %243 = vector.shape_cast %240 : vector<2x128xf32> to vector<2x1x128xf32>
      tpu.vector_store %arg6[%c0_56, %c5_57, %c0_58], %243 {strides = array<i32>} : memref<2x8x128xf32, #tpu.memory_space<vmem>>, vector<2x1x128xf32>,
      %c0_59 = arith.constant 0 : index
      %c6 = arith.constant 6 : index
      %c0_60 = arith.constant 0 : index
      %244 = vector.load %arg4[%c0_59, %c6, %c0_60] : memref<2x8x512xbf16, #tpu.memory_space<vmem>>, vector<2x1x512xbf16>
      %245 = vector.shape_cast %244 : vector<2x1x512xbf16> to vector<2x512xbf16>
      %246 = arith.truncf %233 : vector<2x128xf32> to vector<2x128xbf16>
      %cst_61 = arith.constant dense<0.000000e+00> : vector<2x512xf32>
      %247 = tpu.matmul %246, %13, %cst_61 {dimension_numbers = #tpu.dot_dimension_numbers<[1], [0], [0], [1], [0, 0, 1, 1], [], []>} : vector<2x128xbf16>, vector<128x512xbf16>, vector<2x512xf32> -> vector<2x512xf32>
      %248 = arith.extf %245 : vector<2x512xbf16> to vector<2x512xf32>
      %249 = arith.addf %248, %247 : vector<2x512xf32>
      %250 = vector.extract_strided_slice %249 {offsets = [0, 0], sizes = [2, 384], strides = [1, 1]} : vector<2x512xf32> to vector<2x384xf32>
      %251 = arith.negf %250 : vector<2x384xf32>
      %252 = math.exp %251 : vector<2x384xf32>
      %cst_62 = arith.constant 1.000000e+00 : f32
      %253 = vector.broadcast %cst_62 : f32 to vector<2x384xf32>
      %254 = arith.addf %253, %252 : vector<2x384xf32>
      %255 = arith.divf %253, %254 : vector<2x384xf32>
      %256 = vector.extract_strided_slice %255 {offsets = [0, 0], sizes = [2, 128], strides = [1, 1]} : vector<2x384xf32> to vector<2x128xf32>
      %257 = vector.extract_strided_slice %255 {offsets = [0, 128], sizes = [2, 128], strides = [1, 1]} : vector<2x384xf32> to vector<2x128xf32>
      %258 = vector.extract_strided_slice %255 {offsets = [0, 256], sizes = [2, 128], strides = [1, 1]} : vector<2x384xf32> to vector<2x128xf32>
      %259 = vector.extract_strided_slice %249 {offsets = [0, 384], sizes = [2, 128], strides = [1, 1]} : vector<2x512xf32> to vector<2x128xf32>
      %260 = math.tanh %259 : vector<2x128xf32>
      %261 = arith.mulf %257, %236 : vector<2x128xf32>
      %262 = arith.mulf %256, %260 : vector<2x128xf32>
      %263 = arith.addf %261, %262 : vector<2x128xf32>
      %264 = math.tanh %263 : vector<2x128xf32>
      %265 = arith.mulf %258, %264 : vector<2x128xf32>
      %c6_i32 = arith.constant 6 : i32
      %266 = arith.addi %0, %c6_i32 : i32
      %267 = vector.broadcast %266 : i32 to vector<2x1xi32>
      %268 = arith.cmpi slt, %267, %12 : vector<2x1xi32>
      %269 = vector.shape_cast %268 : vector<2x1xi1> to vector<2x1xi1>
      %270 = vector.broadcast %269 : vector<2x1xi1> to vector<2x128xi1>
      %271 = arith.select %270, %265, %233 : vector<2x128xi1>, vector<2x128xf32>
      %272 = vector.shape_cast %268 : vector<2x1xi1> to vector<2x1xi1>
      %273 = vector.broadcast %272 : vector<2x1xi1> to vector<2x128xi1>
      %274 = arith.select %273, %263, %236 : vector<2x128xi1>, vector<2x128xf32>
      %cst_63 = arith.constant 0.000000e+00 : f32
      %275 = vector.shape_cast %268 : vector<2x1xi1> to vector<2x1xi1>
      %276 = vector.broadcast %275 : vector<2x1xi1> to vector<2x128xi1>
      %277 = vector.broadcast %cst_63 : f32 to vector<2x128xf32>
      %278 = arith.select %276, %265, %277 : vector<2x128xi1>, vector<2x128xf32>
      %c0_64 = arith.constant 0 : index
      %c6_65 = arith.constant 6 : index
      %c0_66 = arith.constant 0 : index
      %279 = vector.load %arg6[%c0_64, %c6_65, %c0_66] : memref<2x8x128xf32, #tpu.memory_space<vmem>>, vector<2x1x128xf32>
      %280 = vector.shape_cast %279 : vector<2x1x128xf32> to vector<2x128xf32>
      %281 = vector.shape_cast %278 : vector<2x128xf32> to vector<2x1x128xf32>
      tpu.vector_store %arg6[%c0_64, %c6_65, %c0_66], %281 {strides = array<i32>} : memref<2x8x128xf32, #tpu.memory_space<vmem>>, vector<2x1x128xf32>,
      %c0_67 = arith.constant 0 : index
      %c7 = arith.constant 7 : index
      %c0_68 = arith.constant 0 : index
      %282 = vector.load %arg4[%c0_67, %c7, %c0_68] : memref<2x8x512xbf16, #tpu.memory_space<vmem>>, vector<2x1x512xbf16>
      %283 = vector.shape_cast %282 : vector<2x1x512xbf16> to vector<2x512xbf16>
      %284 = arith.truncf %271 : vector<2x128xf32> to vector<2x128xbf16>
      %cst_69 = arith.constant dense<0.000000e+00> : vector<2x512xf32>
      %285 = tpu.matmul %284, %13, %cst_69 {dimension_numbers = #tpu.dot_dimension_numbers<[1], [0], [0], [1], [0, 0, 1, 1], [], []>} : vector<2x128xbf16>, vector<128x512xbf16>, vector<2x512xf32> -> vector<2x512xf32>
      %286 = arith.extf %283 : vector<2x512xbf16> to vector<2x512xf32>
      %287 = arith.addf %286, %285 : vector<2x512xf32>
      %288 = vector.extract_strided_slice %287 {offsets = [0, 0], sizes = [2, 384], strides = [1, 1]} : vector<2x512xf32> to vector<2x384xf32>
      %289 = arith.negf %288 : vector<2x384xf32>
      %290 = math.exp %289 : vector<2x384xf32>
      %cst_70 = arith.constant 1.000000e+00 : f32
      %291 = vector.broadcast %cst_70 : f32 to vector<2x384xf32>
      %292 = arith.addf %291, %290 : vector<2x384xf32>
      %293 = arith.divf %291, %292 : vector<2x384xf32>
      %294 = vector.extract_strided_slice %293 {offsets = [0, 0], sizes = [2, 128], strides = [1, 1]} : vector<2x384xf32> to vector<2x128xf32>
      %295 = vector.extract_strided_slice %293 {offsets = [0, 128], sizes = [2, 128], strides = [1, 1]} : vector<2x384xf32> to vector<2x128xf32>
      %296 = vector.extract_strided_slice %293 {offsets = [0, 256], sizes = [2, 128], strides = [1, 1]} : vector<2x384xf32> to vector<2x128xf32>
      %297 = vector.extract_strided_slice %287 {offsets = [0, 384], sizes = [2, 128], strides = [1, 1]} : vector<2x512xf32> to vector<2x128xf32>
      %298 = math.tanh %297 : vector<2x128xf32>
      %299 = arith.mulf %295, %274 : vector<2x128xf32>
      %300 = arith.mulf %294, %298 : vector<2x128xf32>
      %301 = arith.addf %299, %300 : vector<2x128xf32>
      %302 = math.tanh %301 : vector<2x128xf32>
      %303 = arith.mulf %296, %302 : vector<2x128xf32>
      %c7_i32 = arith.constant 7 : i32
      %304 = arith.addi %0, %c7_i32 : i32
      %305 = vector.broadcast %304 : i32 to vector<2x1xi32>
      %306 = arith.cmpi slt, %305, %12 : vector<2x1xi32>
      %307 = vector.shape_cast %306 : vector<2x1xi1> to vector<2x1xi1>
      %308 = vector.broadcast %307 : vector<2x1xi1> to vector<2x128xi1>
      %309 = arith.select %308, %303, %271 : vector<2x128xi1>, vector<2x128xf32>
      %310 = vector.shape_cast %306 : vector<2x1xi1> to vector<2x1xi1>
      %311 = vector.broadcast %310 : vector<2x1xi1> to vector<2x128xi1>
      %312 = arith.select %311, %301, %274 : vector<2x128xi1>, vector<2x128xf32>
      %cst_71 = arith.constant 0.000000e+00 : f32
      %313 = vector.shape_cast %306 : vector<2x1xi1> to vector<2x1xi1>
      %314 = vector.broadcast %313 : vector<2x1xi1> to vector<2x128xi1>
      %315 = vector.broadcast %cst_71 : f32 to vector<2x128xf32>
      %316 = arith.select %314, %303, %315 : vector<2x128xi1>, vector<2x128xf32>
      %c0_72 = arith.constant 0 : index
      %c7_73 = arith.constant 7 : index
      %c0_74 = arith.constant 0 : index
      %317 = vector.load %arg6[%c0_72, %c7_73, %c0_74] : memref<2x8x128xf32, #tpu.memory_space<vmem>>, vector<2x1x128xf32>
      %318 = vector.shape_cast %317 : vector<2x1x128xf32> to vector<2x128xf32>
      %319 = vector.shape_cast %316 : vector<2x128xf32> to vector<2x1x128xf32>
      tpu.vector_store %arg6[%c0_72, %c7_73, %c0_74], %319 {strides = array<i32>} : memref<2x8x128xf32, #tpu.memory_space<vmem>>, vector<2x1x128xf32>,
      %c0_75 = arith.constant 0 : index
      %c0_76 = arith.constant 0 : index
      %320 = vector.load %arg7[%c0_75, %c0_76] : memref<2x128xf32, #tpu.memory_space<vmem>>, vector<2x128xf32>
      tpu.vector_store %arg7[%c0_75, %c0_76], %309 {strides = array<i32>} : memref<2x128xf32, #tpu.memory_space<vmem>>, vector<2x128xf32>,
      %c0_77 = arith.constant 0 : index
      %c0_78 = arith.constant 0 : index
      %321 = vector.load %arg8[%c0_77, %c0_78] : memref<2x128xf32, #tpu.memory_space<vmem>>, vector<2x128xf32>
      tpu.vector_store %arg8[%c0_77, %c0_78], %312 {strides = array<i32>} : memref<2x128xf32, #tpu.memory_space<vmem>>, vector<2x128xf32>,
    } else {
    }
    return
  }
  func.func @transform_0(%arg0: i32, %arg1: i32, %arg2: memref<1xi32, #tpu.memory_space<smem>>) -> (i32, i32) {
    %c0_i32 = arith.constant 0 : i32
    %c0_i32_0 = arith.constant 0 : i32
    return %arg0, %c0_i32 : i32, i32
  }
  func.func @transform_1(%arg0: i32, %arg1: i32, %arg2: memref<1xi32, #tpu.memory_space<smem>>) -> (i32, i32, i32) {
    %c0_i32 = arith.constant 0 : i32
    %c0_i32_0 = arith.constant 0 : i32
    return %arg0, %arg1, %c0_i32 : i32, i32, i32
  }
  func.func @transform_2(%arg0: i32, %arg1: i32, %arg2: memref<1xi32, #tpu.memory_space<smem>>) -> (i32, i32) {
    %c0_i32 = arith.constant 0 : i32
    %c0_i32_0 = arith.constant 0 : i32
    %c0_i32_1 = arith.constant 0 : i32
    return %c0_i32, %c0_i32_0 : i32, i32
  }
  func.func @transform_3(%arg0: i32, %arg1: i32, %arg2: memref<1xi32, #tpu.memory_space<smem>>) -> (i32, i32, i32) {
    %c0_i32 = arith.constant 0 : i32
    %c0_i32_0 = arith.constant 0 : i32
    return %arg0, %arg1, %c0_i32 : i32, i32, i32
  }
  func.func @transform_4(%arg0: i32, %arg1: i32, %arg2: memref<1xi32, #tpu.memory_space<smem>>) -> (i32, i32) {
    %c0_i32 = arith.constant 0 : i32
    %c0_i32_0 = arith.constant 0 : i32
    return %arg0, %c0_i32 : i32, i32
  }
  func.func @transform_5(%arg0: i32, %arg1: i32, %arg2: memref<1xi32, #tpu.memory_space<smem>>) -> (i32, i32) {
    %c0_i32 = arith.constant 0 : i32
    %c0_i32_0 = arith.constant 0 : i32
    return %arg0, %c0_i32 : i32, i32
  }
}

</mosaic_0001>

<llo_original>
// kernel: tpu_custom_call.1
$region0: #{tpu_custom_call.1}
  #allocation0 [shape = 'u32[]', space=smem, size = 0x4, offset = 0x4, fixed_abs, tag = 'smem constant byte address 0x4 - core index']
  #allocation1 [shape = 'u32[72,128]{1,0:T(1,128)}', space=vmem, size = 0x9000, scoped, tag = 'internal scratch']
  #allocation2 [shape = 's32[1]{0}', space=sflag, size = 0x4, scoped, tag = 'scoped memory for tpu_custom_call.1']
  #allocation3 [shape = 's32[1]{0:T(128)S(6)}', space=smem, size = 0x200, scoped, tag = 'prefetched SMEM operand 0']
  %s0 = inlined_call_operand.<no memory space> [shape: s32[1], index: 0, kind: input, shape index: {}]
  %s1 = inlined_call_operand.vmem [shape: s32[2,1], index: 1, kind: input, shape index: {}]
  %s2 = inlined_call_operand.hbm [shape: bf16[2,8,512], index: 2, kind: input, shape index: {}]
  %s3 = inlined_call_operand.hbm [shape: bf16[128,512], index: 3, kind: input, shape index: {}]
  %s4 = inlined_call_operand.hbm [shape: f32[2,8,128], index: 4, kind: output, shape index: {0}]
  %s5 = inlined_call_operand.hbm [shape: f32[2,128], index: 5, kind: output, shape index: {1}]
  %s6 = inlined_call_operand.hbm [shape: f32[2,128], index: 6, kind: output, shape index: {2}]
  %7 = xla_tuple %s4, %s5, %s6
  %s8 = sld [smem:[#allocation0]]
  $region58: #{tpu_custom_call.1} parent=0
    _
  %s10 = ssub.s32 1, %s8
  %s11 = scalar_select 0, %s10, %s8
  %12 = sst [smem:[#allocation3]] %s0
  $region1: #{tpu_custom_call.1} parent=0
    #allocation4 [shape = 'u8[16384]{0}', space=vmem, size = 0x4000, scoped, tag = 'input window, operand 2, single buffered']
    #allocation5 [shape = 's32[1]{0}', space=sflag, size = 0x4, scoped, tag = 'scoped memory for tpu_custom_call.1']
    #allocation6 [shape = 's32[1]{0}', space=sflag, size = 0x4, scoped, tag = 'scoped memory for tpu_custom_call.1']
    #allocation7 [shape = 'u8[131072]{0}', space=vmem, size = 0x20000, scoped, tag = 'input window, operand 3, single buffered']
    #allocation8 [shape = 's32[1]{0}', space=sflag, size = 0x4, scoped, tag = 'scoped memory for tpu_custom_call.1']
    #allocation9 [shape = 'u8[8192]{0}', space=vmem, size = 0x2000, scoped, tag = 'output window, operand 0, single buffered']
    #allocation10 [shape = 'u8[1024]{0}', space=vmem, size = 0x400, scoped, tag = 'output window, operand 1, single buffered']
    #allocation11 [shape = 's32[1]{0}', space=sflag, size = 0x4, scoped, tag = 'scoped memory for tpu_custom_call.1']
    #allocation12 [shape = 'u8[1024]{0}', space=vmem, size = 0x400, scoped, tag = 'output window, operand 2, single buffered']
    %13 = vsyncpa [#allocation5], 0
    %14 = vsyncpa [#allocation8], 0
    %15 = vsyncpa [#allocation6], 0
    %16 = vsyncpa [#allocation11], 0
    // Predicated region
    $region2: #{tpu_custom_call.1} parent=1 // pred_check
      _
    $region3: #{tpu_custom_call.1} parent=1 // pred_check_branch
      %18 = sbr.rel (0) target = $region5
    $region4: #{tpu_custom_call.1} parent=1 // pred_region
      _
    $region5: #{tpu_custom_call.1} parent=1 // pred_fallthru
      _
    // Predicated region
    $region6: #{tpu_custom_call.1} parent=1 // pred_check
      _
    $region7: #{tpu_custom_call.1} parent=1 // pred_check_branch
      %20 = sbr.rel (0) target = $region9
    $region8: #{tpu_custom_call.1} parent=1 // pred_region
      %22 = vsyncadd [#allocation5], 0
      %s23 = sshll.u32 %s2, 4
      %s24 = int_to_ptr.hbm [resolvable:$true] %s23
      %s25 = sshll.u32 [#allocation4], 4
      %s26 = int_to_ptr.vmem [resolvable:$true] %s25
      %31 = dma.hbm_to_vmem [thread:$0]  %s24, 512, %s26, [#allocation5], 256, 256, 16
    $region9: #{tpu_custom_call.1} parent=1 // pred_fallthru
      _
    // Predicated region
    $region10: #{tpu_custom_call.1} parent=1 // pred_check
      _
    $region11: #{tpu_custom_call.1} parent=1 // pred_check_branch
      %33 = sbr.rel (0) target = $region13
    $region12: #{tpu_custom_call.1} parent=1 // pred_region
      %35 = vsyncadd [#allocation8], 0
      %s36 = sshll.u32 %s3, 4
      %s37 = int_to_ptr.hbm [resolvable:$true] %s36
      %s38 = sshll.u32 [#allocation7], 4
      %s39 = int_to_ptr.vmem [resolvable:$true] %s38
      %44 = dma.hbm_to_vmem [thread:$0]  %s37, 4096, %s39, [#allocation8], 256, 256, 16
    $region13: #{tpu_custom_call.1} parent=1 // pred_fallthru
      _
    // Predicated region
    $region14: #{tpu_custom_call.1} parent=1 // pred_check
      _
    $region15: #{tpu_custom_call.1} parent=1 // pred_check_branch
      %46 = sbr.rel (0) target = $region17
    $region16: #{tpu_custom_call.1} parent=1 // pred_region
      %48 = dma.done [#allocation5], 512
    $region17: #{tpu_custom_call.1} parent=1 // pred_fallthru
      _
    // Predicated region
    $region18: #{tpu_custom_call.1} parent=1 // pred_check
      _
    $region19: #{tpu_custom_call.1} parent=1 // pred_check_branch
      %50 = sbr.rel (0) target = $region21
    $region20: #{tpu_custom_call.1} parent=1 // pred_region
      %52 = dma.done [#allocation8], 4096
    $region21: #{tpu_custom_call.1} parent=1 // pred_fallthru
      _
    %s53 = smul.u32 0, 8
    %p54 = scmp.eq.s32.totalorder 0, 0
    // Predicated region
    $region22: #{tpu_custom_call.1} parent=1 // pred_check
      %p55 = pneg %p54
    $region23: #{tpu_custom_call.1} parent=1 // pred_check_branch
      %57 = sbr.rel (%p55) target = $region25
    $region24: #{tpu_custom_call.1} parent=1 // pred_region
      %58 = vst [vmem:[#allocation10] sm:$0x3] 0.0
      %59 = vst [vmem:[#allocation12] sm:$0x3] 0.0
    $region25: #{tpu_custom_call.1} parent=1 // pred_fallthru
      _
    %s60 = sld [smem:[#allocation3]]
    %p61 = scmp.ge.s32.totalorder %s53, %s60
    // Predicated region
    $region26: #{tpu_custom_call.1} parent=1 // pred_check
      %p62 = pneg %p61
    $region27: #{tpu_custom_call.1} parent=1 // pred_check_branch
      %64 = sbr.rel (%p62) target = $region29
    $region28: #{tpu_custom_call.1} parent=1 // pred_region
      %65 = vst [vmem:[#allocation9] sm:$0xff] 0.0
      %66 = vst [vmem:[#allocation9 + $0x8] sm:$0xff] 0.0
    $region29: #{tpu_custom_call.1} parent=1 // pred_fallthru
      _
    %p67 = scmp.lt.s32.totalorder %s53, %s60
    // Predicated region
    $region30: #{tpu_custom_call.1} parent=1 // pred_check
      %p68 = pneg %p67
    $region31: #{tpu_custom_call.1} parent=1 // pred_check_branch
      %70 = sbr.rel (%p68) target = $region33
    $region32: #{tpu_custom_call.1} parent=1 // pred_region
      %v71 = vld [vmem:[%s1] sm:$0x3]
      %v72 = vld [vmem:[#allocation7] sm:$0xff]
      %v73 = vld [vmem:[#allocation7 + $0x8] sm:$0xff]
      %v74 = vld [vmem:[#allocation7 + $0x10] sm:$0xff]
      %v75 = vld [vmem:[#allocation7 + $0x18] sm:$0xff]
      %v76 = vld [vmem:[#allocation7 + $0x20] sm:$0xff]
      %v77 = vld [vmem:[#allocation7 + $0x28] sm:$0xff]
      %v78 = vld [vmem:[#allocation7 + $0x30] sm:$0xff]
      %v79 = vld [vmem:[#allocation7 + $0x38] sm:$0xff]
      %v80 = vld [vmem:[#allocation7 + $0x40] sm:$0xff]
      %v81 = vld [vmem:[#allocation7 + $0x48] sm:$0xff]
      %v82 = vld [vmem:[#allocation7 + $0x50] sm:$0xff]
      %v83 = vld [vmem:[#allocation7 + $0x58] sm:$0xff]
      %v84 = vld [vmem:[#allocation7 + $0x60] sm:$0xff]
      %v85 = vld [vmem:[#allocation7 + $0x68] sm:$0xff]
      %v86 = vld [vmem:[#allocation7 + $0x70] sm:$0xff]
      %v87 = vld [vmem:[#allocation7 + $0x78] sm:$0xff]
      %v88 = vld [vmem:[#allocation7 + $0x80] sm:$0xff]
      %v89 = vld [vmem:[#allocation7 + $0x88] sm:$0xff]
      %v90 = vld [vmem:[#allocation7 + $0x90] sm:$0xff]
      %v91 = vld [vmem:[#allocation7 + $0x98] sm:$0xff]
      %v92 = vld [vmem:[#allocation7 + $0xa0] sm:$0xff]
      %v93 = vld [vmem:[#allocation7 + $0xa8] sm:$0xff]
      %v94 = vld [vmem:[#allocation7 + $0xb0] sm:$0xff]
      %v95 = vld [vmem:[#allocation7 + $0xb8] sm:$0xff]
      %v96 = vld [vmem:[#allocation7 + $0xc0] sm:$0xff]
      %v97 = vld [vmem:[#allocation7 + $0xc8] sm:$0xff]
      %v98 = vld [vmem:[#allocation7 + $0xd0] sm:$0xff]
      %v99 = vld [vmem:[#allocation7 + $0xd8] sm:$0xff]
      %v100 = vld [vmem:[#allocation7 + $0xe0] sm:$0xff]
      %v101 = vld [vmem:[#allocation7 + $0xe8] sm:$0xff]
      %v102 = vld [vmem:[#allocation7 + $0xf0] sm:$0xff]
      %v103 = vld [vmem:[#allocation7 + $0xf8] sm:$0xff]
      %v104 = vld [vmem:[#allocation10] sm:$0x3]
      %v105 = vld [vmem:[#allocation12] sm:$0x3]
      %v106 = vld [vmem:[#allocation4] sm:$0x11]
      %v107 = vld [vmem:[#allocation4 + $0x8] sm:$0x11]
      %v108 = vld [vmem:[#allocation4 + $0x10] sm:$0x11]
      %v109 = vld [vmem:[#allocation4 + $0x18] sm:$0x11]
      %v110 = vpack.c.bf16 %v104, %v104
      %v143 = vunpack.c.l.b16 %v72
      %v144 = vunpack.c.h.b16 %v72
      %v145 = vunpack.c.l.b16 %v73
      %v146 = vunpack.c.h.b16 %v73
      %v147 = vunpack.c.l.b16 %v74
      %v148 = vunpack.c.h.b16 %v74
      %v149 = vunpack.c.l.b16 %v75
      %v150 = vunpack.c.h.b16 %v75
      %v151 = vunpack.c.l.b16 %v76
      %v152 = vunpack.c.h.b16 %v76
      %v153 = vunpack.c.l.b16 %v77
      %v154 = vunpack.c.h.b16 %v77
      %v155 = vunpack.c.l.b16 %v78
      %v156 = vunpack.c.h.b16 %v78
      %v157 = vunpack.c.l.b16 %v79
      %v158 = vunpack.c.h.b16 %v79
      %v159 = vunpack.c.l.b16 %v80
      %v160 = vunpack.c.h.b16 %v80
      %v161 = vunpack.c.l.b16 %v81
      %v162 = vunpack.c.h.b16 %v81
      %v163 = vunpack.c.l.b16 %v82
      %v164 = vunpack.c.h.b16 %v82
      %v165 = vunpack.c.l.b16 %v83
      %v166 = vunpack.c.h.b16 %v83
      %v167 = vunpack.c.l.b16 %v84
      %v168 = vunpack.c.h.b16 %v84
      %v169 = vunpack.c.l.b16 %v85
      %v170 = vunpack.c.h.b16 %v85
      %v171 = vunpack.c.l.b16 %v86
      %v172 = vunpack.c.h.b16 %v86
      %v173 = vunpack.c.l.b16 %v87
      %v174 = vunpack.c.h.b16 %v87
      %v175 = vunpack.c.l.b16 %v88
      %v176 = vunpack.c.h.b16 %v88
      %v177 = vunpack.c.l.b16 %v89
      %v178 = vunpack.c.h.b16 %v89
      %v179 = vunpack.c.l.b16 %v90
      %v180 = vunpack.c.h.b16 %v90
      %v181 = vunpack.c.l.b16 %v91
      %v182 = vunpack.c.h.b16 %v91
      %v183 = vunpack.c.l.b16 %v92
      %v184 = vunpack.c.h.b16 %v92
      %v185 = vunpack.c.l.b16 %v93
      %v186 = vunpack.c.h.b16 %v93
      %v187 = vunpack.c.l.b16 %v94
      %v188 = vunpack.c.h.b16 %v94
      %v189 = vunpack.c.l.b16 %v95
      %v190 = vunpack.c.h.b16 %v95
      %v191 = vunpack.c.l.b16 %v96
      %v192 = vunpack.c.h.b16 %v96
      %v193 = vunpack.c.l.b16 %v97
      %v194 = vunpack.c.h.b16 %v97
      %v195 = vunpack.c.l.b16 %v98
      %v196 = vunpack.c.h.b16 %v98
      %v197 = vunpack.c.l.b16 %v99
      %v198 = vunpack.c.h.b16 %v99
      %v199 = vunpack.c.l.b16 %v100
      %v200 = vunpack.c.h.b16 %v100
      %v201 = vunpack.c.l.b16 %v101
      %v202 = vunpack.c.h.b16 %v101
      %v203 = vunpack.c.l.b16 %v102
      %v204 = vunpack.c.h.b16 %v102
      %v205 = vunpack.c.l.b16 %v103
      %v206 = vunpack.c.h.b16 %v103
      %v207 = vpack.c.b16 %v147, %v143
      %v208 = vpack.c.b16 %v148, %v144
      %v209 = vpack.c.b16 %v149, %v145
      %v210 = vpack.c.b16 %v150, %v146
      %v211 = vpack.c.b16 %v155, %v151
      %v212 = vpack.c.b16 %v156, %v152
      %v213 = vpack.c.b16 %v157, %v153
      %v214 = vpack.c.b16 %v158, %v154
      %v215 = vpack.c.b16 %v163, %v159
      %v216 = vpack.c.b16 %v164, %v160
      %v217 = vpack.c.b16 %v165, %v161
      %v218 = vpack.c.b16 %v166, %v162
      %v219 = vpack.c.b16 %v171, %v167
      %v220 = vpack.c.b16 %v172, %v168
      %v221 = vpack.c.b16 %v173, %v169
      %v222 = vpack.c.b16 %v174, %v170
      %v223 = vpack.c.b16 %v179, %v175
      %v224 = vpack.c.b16 %v180, %v176
      %v225 = vpack.c.b16 %v181, %v177
      %v226 = vpack.c.b16 %v182, %v178
      %v227 = vpack.c.b16 %v187, %v183
      %v228 = vpack.c.b16 %v188, %v184
      %v229 = vpack.c.b16 %v189, %v185
      %v230 = vpack.c.b16 %v190, %v186
      %v231 = vpack.c.b16 %v195, %v191
      %v232 = vpack.c.b16 %v196, %v192
      %v233 = vpack.c.b16 %v197, %v193
      %v234 = vpack.c.b16 %v198, %v194
      %v235 = vpack.c.b16 %v203, %v199
      %v236 = vpack.c.b16 %v204, %v200
      %v237 = vpack.c.b16 %v205, %v201
      %v238 = vpack.c.b16 %v206, %v202
      %271 = vmatpush.bf16.msra.mxu0 %v235
      %272 = vmatpush.bf16.msra.mxu0 %v231
      %273 = vmatpush.bf16.msra.mxu0 %v227
      %274 = vmatpush.bf16.msra.mxu0 %v223
      %275 = vmatpush.bf16.msra.mxu0 %v219
      %276 = vmatpush.bf16.msra.mxu0 %v215
      %277 = vmatpush.bf16.msra.mxu0 %v211
      %278 = vmatpush.bf16.msra.mxu0 %v207
      %279 = vmatmul.bf16.gmra.mxu0 %v110
      %v280 = vpop.f32.mrf.mxu0
      %v281 = vadd.f32 0.0, %v280
      %v282 = vpop.f32.mrf.mxu0
      %283 = vdwg.mxu0
      %284 = vmatpush.bf16.msra.mxu0 %v236
      %285 = vmatpush.bf16.msra.mxu0 %v232
      %286 = vmatpush.bf16.msra.mxu0 %v228
      %287 = vmatpush.bf16.msra.mxu0 %v224
      %288 = vmatpush.bf16.msra.mxu0 %v220
      %289 = vmatpush.bf16.msra.mxu0 %v216
      %290 = vmatpush.bf16.msra.mxu0 %v212
      %291 = vmatpush.bf16.msra.mxu0 %v208
      %292 = vmatmul.bf16.gmra.mxu0 %v110
      %v293 = vpop.f32.mrf.mxu0
      %v294 = vadd.f32 0.0, %v293
      %v295 = vpop.f32.mrf.mxu0
      %296 = vdwg.mxu0
      %297 = vmatpush.bf16.msra.mxu0 %v237
      %298 = vmatpush.bf16.msra.mxu0 %v233
      %299 = vmatpush.bf16.msra.mxu0 %v229
      %300 = vmatpush.bf16.msra.mxu0 %v225
      %301 = vmatpush.bf16.msra.mxu0 %v221
      %302 = vmatpush.bf16.msra.mxu0 %v217
      %303 = vmatpush.bf16.msra.mxu0 %v213
      %304 = vmatpush.bf16.msra.mxu0 %v209
      %305 = vmatmul.bf16.gmra.mxu0 %v110
      %v306 = vpop.f32.mrf.mxu0
      %v307 = vadd.f32 0.0, %v306
      %v308 = vpop.f32.mrf.mxu0
      %309 = vdwg.mxu0
      %310 = vmatpush.bf16.msra.mxu0 %v238
      %311 = vmatpush.bf16.msra.mxu0 %v234
      %312 = vmatpush.bf16.msra.mxu0 %v230
      %313 = vmatpush.bf16.msra.mxu0 %v226
      %314 = vmatpush.bf16.msra.mxu0 %v222
      %315 = vmatpush.bf16.msra.mxu0 %v218
      %316 = vmatpush.bf16.msra.mxu0 %v214
      %317 = vmatpush.bf16.msra.mxu0 %v210
      %318 = vmatmul.bf16.gmra.mxu0 %v110
      %v319 = vpop.f32.mrf.mxu0
      %v320 = vadd.f32 0.0, %v319
      %v321 = vpop.f32.mrf.mxu0
      %322 = vdwg.mxu0
      %v323 = vunpack.c.l.bf16 %v106
      %v324 = vunpack.c.h.bf16 %v106
      %v325 = vunpack.c.l.bf16 %v107
      %v326 = vunpack.c.h.bf16 %v107
      %v327 = vunpack.c.l.bf16 %v108
      %v328 = vunpack.c.h.bf16 %v108
      %v329 = vunpack.c.l.bf16 %v109
      %v330 = vunpack.c.h.bf16 %v109
      %v335 = vrot.slane %v281, 1
      %v336 = vrot.slane %v294, 1
      %v337 = vrot.slane %v307, 1
      %v338 = vrot.slane %v320, 1
      %v347 = vadd.f32 %v323, %v281
      %v348 = vadd.f32 %v324, %v294
      %v349 = vadd.f32 %v325, %v307
      %v350 = vadd.f32 %v326, %v320
      %v351 = vadd.f32 %v327, %v335
      %v352 = vadd.f32 %v328, %v336
      %v353 = vadd.f32 %v329, %v337
      %v354 = vadd.f32 %v330, %v338
      %v355 = vxor.u32 %v347, 2147483648
      %v356 = vxor.u32 %v348, 2147483648
      %v357 = vxor.u32 %v349, 2147483648
      %v358 = vxor.u32 %v351, 2147483648
      %v359 = vxor.u32 %v352, 2147483648
      %v360 = vxor.u32 %v353, 2147483648
      %v361 = vmul.f32 %v355, 1.442695
      %v362 = vpow.pop %v361
      %v363 = vmul.f32 %v356, 1.442695
      %v364 = vpow.pop %v363
      %v365 = vmul.f32 %v357, 1.442695
      %v366 = vpow.pop %v365
      %v367 = vmul.f32 %v358, 1.442695
      %v368 = vpow.pop %v367
      %v369 = vmul.f32 %v359, 1.442695
      %v370 = vpow.pop %v369
      %v371 = vmul.f32 %v360, 1.442695
      %v372 = vpow.pop %v371
      %v373 = vadd.f32 %v362, 1.0
      %v374 = vadd.f32 %v364, 1.0
      %v375 = vadd.f32 %v366, 1.0
      %v376 = vadd.f32 %v368, 1.0
      %v377 = vadd.f32 %v370, 1.0
      %v378 = vadd.f32 %v372, 1.0
      %v379 = vrcp.pop %v373
      %v380 = vmul.f32 %v373, %v379
      %v381 = vsub.f32 1.0, %v380
      %v382 = vmul.f32 %v379, %v381
      %v383 = vadd.f32 %v379, %v382
      %vm384 = vweird.f32 %v373
      %vm385 = vweird.f32 %v379
      %vm386 = vmor %vm384, %vm385
      %v387 = vsel %vm386, %v379, %v383
      %v388 = vand.u32 2147483647, %v373
      %vm389 = vcmp.eq.f32.partialorder %v388, 8.507059e+37
      %v390 = vand.u32 %v373, 2147483648
      %v391 = vor.u32 1.1754944e-38, %v390
      %v392 = vsel %vm389, %v391, %v387
      %v393 = vmul.f32 1.0, %v392
      %v394 = vrcp.pop %v374
      %v395 = vmul.f32 %v374, %v394
      %v396 = vsub.f32 1.0, %v395
      %v397 = vmul.f32 %v394, %v396
      %v398 = vadd.f32 %v394, %v397
      %vm399 = vweird.f32 %v374
      %vm400 = vweird.f32 %v394
      %vm401 = vmor %vm399, %vm400
      %v402 = vsel %vm401, %v394, %v398
      %v403 = vand.u32 2147483647, %v374
      %vm404 = vcmp.eq.f32.partialorder %v403, 8.507059e+37
      %v405 = vand.u32 %v374, 2147483648
      %v406 = vor.u32 1.1754944e-38, %v405
      %v407 = vsel %vm404, %v406, %v402
      %v408 = vmul.f32 1.0, %v407
      %v409 = vrcp.pop %v375
      %v410 = vmul.f32 %v375, %v409
      %v411 = vsub.f32 1.0, %v410
      %v412 = vmul.f32 %v409, %v411
      %v413 = vadd.f32 %v409, %v412
      %vm414 = vweird.f32 %v375
      %vm415 = vweird.f32 %v409
      %vm416 = vmor %vm414, %vm415
      %v417 = vsel %vm416, %v409, %v413
      %v418 = vand.u32 2147483647, %v375
      %vm419 = vcmp.eq.f32.partialorder %v418, 8.507059e+37
      %v420 = vand.u32 %v375, 2147483648
      %v421 = vor.u32 1.1754944e-38, %v420
      %v422 = vsel %vm419, %v421, %v417
      %v423 = vmul.f32 1.0, %v422
      %v424 = vrcp.pop %v376
      %v425 = vmul.f32 %v376, %v424
      %v426 = vsub.f32 1.0, %v425
      %v427 = vmul.f32 %v424, %v426
      %v428 = vadd.f32 %v424, %v427
      %vm429 = vweird.f32 %v376
      %vm430 = vweird.f32 %v424
      %vm431 = vmor %vm429, %vm430
      %v432 = vsel %vm431, %v424, %v428
      %v433 = vand.u32 2147483647, %v376
      %vm434 = vcmp.eq.f32.partialorder %v433, 8.507059e+37
      %v435 = vand.u32 %v376, 2147483648
      %v436 = vor.u32 1.1754944e-38, %v435
      %v437 = vsel %vm434, %v436, %v432
      %v438 = vmul.f32 1.0, %v437
      %v439 = vrcp.pop %v377
      %v440 = vmul.f32 %v377, %v439
      %v441 = vsub.f32 1.0, %v440
      %v442 = vmul.f32 %v439, %v441
      %v443 = vadd.f32 %v439, %v442
      %vm444 = vweird.f32 %v377
      %vm445 = vweird.f32 %v439
      %vm446 = vmor %vm444, %vm445
      %v447 = vsel %vm446, %v439, %v443
      %v448 = vand.u32 2147483647, %v377
      %vm449 = vcmp.eq.f32.partialorder %v448, 8.507059e+37
      %v450 = vand.u32 %v377, 2147483648
      %v451 = vor.u32 1.1754944e-38, %v450
      %v452 = vsel %vm449, %v451, %v447
      %v453 = vmul.f32 1.0, %v452
      %v454 = vrcp.pop %v378
      %v455 = vmul.f32 %v378, %v454
      %v456 = vsub.f32 1.0, %v455
      %v457 = vmul.f32 %v454, %v456
      %v458 = vadd.f32 %v454, %v457
      %vm459 = vweird.f32 %v378
      %vm460 = vweird.f32 %v454
      %vm461 = vmor %vm459, %vm460
      %v462 = vsel %vm461, %v454, %v458
      %v463 = vand.u32 2147483647, %v378
      %vm464 = vcmp.eq.f32.partialorder %v463, 8.507059e+37
      %v465 = vand.u32 %v378, 2147483648
      %v466 = vor.u32 1.1754944e-38, %v465
      %v467 = vsel %vm464, %v466, %v462
      %v468 = vmul.f32 1.0, %v467
      %v469 = vtanh.pop %v350
      %v470 = vtanh.pop %v354
      %v472 = vrot.slane %v105, 1
      %v475 = vmul.f32 %v408, %v105
      %v476 = vmul.f32 %v453, %v472
      %v477 = vmul.f32 %v393, %v469
      %v478 = vmul.f32 %v438, %v470
      %v479 = vadd.f32 %v475, %v477
      %v480 = vadd.f32 %v476, %v478
      %v481 = vtanh.pop %v479
      %v482 = vtanh.pop %v480
      %v483 = vmul.f32 %v423, %v481
      %v484 = vmul.f32 %v468, %v482
      %v485 = vstv %s53
      %vm486 = vcmp.lt.s32.totalorder %v485, %v71
      %v487 = vsel %vm486, 1, 0
      %488 = vset.pattern.permute.xlu0 0
      %489 = vperm.xlu0 %488, %v487
      %v490 = vpop.permute.xlu0 %489
      %vm491 = vcmp.eq.s32.totalorder %v490, 1
      %v494 = vrot.slane %v484, 7
      %vm495 = vcmask 1041409
      %v496 = vsel %vm495, %v494, %v483
      %v498 = vsel %vm491, %v496, %v104
      %v501 = vrot.slane %v480, 7
      %v502 = vsel %vm495, %v501, %v479
      %v504 = vsel %vm491, %v502, %v105
      %v505 = vsel %vm491, %v496, 0.0
      %v507 = vrot.slane %v505, 1
      %509 = vst [vmem:[#allocation9] sm:$0x1] %v505
      %510 = vst [vmem:[#allocation9 + $0x8] sm:$0x1] %v507
      %v511 = vld [vmem:[#allocation4] sm:$0x11]
      %v512 = vld [vmem:[#allocation4 + $0x8] sm:$0x11]
      %v513 = vld [vmem:[#allocation4 + $0x10] sm:$0x11]
      %v514 = vld [vmem:[#allocation4 + $0x18] sm:$0x11]
      %v515 = vpack.c.bf16 %v498, %v498
      %516 = vmatpush.bf16.msra.mxu0 %v235
      %517 = vmatpush.bf16.msra.mxu0 %v231
      %518 = vmatpush.bf16.msra.mxu0 %v227
      %519 = vmatpush.bf16.msra.mxu0 %v223
      %520 = vmatpush.bf16.msra.mxu0 %v219
      %521 = vmatpush.bf16.msra.mxu0 %v215
      %522 = vmatpush.bf16.msra.mxu0 %v211
      %523 = vmatpush.bf16.msra.mxu0 %v207
      %524 = vmatmul.bf16.gmra.mxu0 %v515
      %v525 = vpop.f32.mrf.mxu0
      %v526 = vadd.f32 0.0, %v525
      %v527 = vpop.f32.mrf.mxu0
      %528 = vdwg.mxu0
      %529 = vmatpush.bf16.msra.mxu0 %v236
      %530 = vmatpush.bf16.msra.mxu0 %v232
      %531 = vmatpush.bf16.msra.mxu0 %v228
      %532 = vmatpush.bf16.msra.mxu0 %v224
      %533 = vmatpush.bf16.msra.mxu0 %v220
      %534 = vmatpush.bf16.msra.mxu0 %v216
      %535 = vmatpush.bf16.msra.mxu0 %v212
      %536 = vmatpush.bf16.msra.mxu0 %v208
      %537 = vmatmul.bf16.gmra.mxu0 %v515
      %v538 = vpop.f32.mrf.mxu0
      %v539 = vadd.f32 0.0, %v538
      %v540 = vpop.f32.mrf.mxu0
      %541 = vdwg.mxu0
      %542 = vmatpush.bf16.msra.mxu0 %v237
      %543 = vmatpush.bf16.msra.mxu0 %v233
      %544 = vmatpush.bf16.msra.mxu0 %v229
      %545 = vmatpush.bf16.msra.mxu0 %v225
      %546 = vmatpush.bf16.msra.mxu0 %v221
      %547 = vmatpush.bf16.msra.mxu0 %v217
      %548 = vmatpush.bf16.msra.mxu0 %v213
      %549 = vmatpush.bf16.msra.mxu0 %v209
      %550 = vmatmul.bf16.gmra.mxu0 %v515
      %v551 = vpop.f32.mrf.mxu0
      %v552 = vadd.f32 0.0, %v551
      %v553 = vpop.f32.mrf.mxu0
      %554 = vdwg.mxu0
      %555 = vmatpush.bf16.msra.mxu0 %v238
      %556 = vmatpush.bf16.msra.mxu0 %v234
      %557 = vmatpush.bf16.msra.mxu0 %v230
      %558 = vmatpush.bf16.msra.mxu0 %v226
      %559 = vmatpush.bf16.msra.mxu0 %v222
      %560 = vmatpush.bf16.msra.mxu0 %v218
      %561 = vmatpush.bf16.msra.mxu0 %v214
      %562 = vmatpush.bf16.msra.mxu0 %v210
      %563 = vmatmul.bf16.gmra.mxu0 %v515
      %v564 = vpop.f32.mrf.mxu0
      %v565 = vadd.f32 0.0, %v564
      %v566 = vpop.f32.mrf.mxu0
      %567 = vdwg.mxu0
      %v568 = vunpack.c.l.bf16 %v511
      %v569 = vunpack.c.h.bf16 %v511
      %v570 = vunpack.c.l.bf16 %v512
      %v571 = vunpack.c.h.bf16 %v512
      %v572 = vunpack.c.l.bf16 %v513
      %v573 = vunpack.c.h.bf16 %v513
      %v574 = vunpack.c.l.bf16 %v514
      %v575 = vunpack.c.h.bf16 %v514
      %v580 = vrot.slane %v526, 7
      %v581 = vrot.slane %v539, 7
      %v582 = vrot.slane %v552, 7
      %v583 = vrot.slane %v565, 7
      %v592 = vadd.f32 %v568, %v580
      %v593 = vadd.f32 %v569, %v581
      %v594 = vadd.f32 %v570, %v582
      %v595 = vadd.f32 %v571, %v583
      %v596 = vadd.f32 %v572, %v526
      %v597 = vadd.f32 %v573, %v539
      %v598 = vadd.f32 %v574, %v552
      %v599 = vadd.f32 %v575, %v565
      %v600 = vxor.u32 %v592, 2147483648
      %v601 = vxor.u32 %v593, 2147483648
      %v602 = vxor.u32 %v594, 2147483648
      %v603 = vxor.u32 %v596, 2147483648
      %v604 = vxor.u32 %v597, 2147483648
      %v605 = vxor.u32 %v598, 2147483648
      %v606 = vmul.f32 %v600, 1.442695
      %v607 = vpow.pop %v606
      %v608 = vmul.f32 %v601, 1.442695
      %v609 = vpow.pop %v608
      %v610 = vmul.f32 %v602, 1.442695
      %v611 = vpow.pop %v610
      %v612 = vmul.f32 %v603, 1.442695
      %v613 = vpow.pop %v612
      %v614 = vmul.f32 %v604, 1.442695
      %v615 = vpow.pop %v614
      %v616 = vmul.f32 %v605, 1.442695
      %v617 = vpow.pop %v616
      %v618 = vadd.f32 %v607, 1.0
      %v619 = vadd.f32 %v609, 1.0
      %v620 = vadd.f32 %v611, 1.0
      %v621 = vadd.f32 %v613, 1.0
      %v622 = vadd.f32 %v615, 1.0
      %v623 = vadd.f32 %v617, 1.0
      %v624 = vrcp.pop %v618
      %v625 = vmul.f32 %v618, %v624
      %v626 = vsub.f32 1.0, %v625
      %v627 = vmul.f32 %v624, %v626
      %v628 = vadd.f32 %v624, %v627
      %vm629 = vweird.f32 %v618
      %vm630 = vweird.f32 %v624
      %vm631 = vmor %vm629, %vm630
      %v632 = vsel %vm631, %v624, %v628
      %v633 = vand.u32 2147483647, %v618
      %vm634 = vcmp.eq.f32.partialorder %v633, 8.507059e+37
      %v635 = vand.u32 %v618, 2147483648
      %v636 = vor.u32 1.1754944e-38, %v635
      %v637 = vsel %vm634, %v636, %v632
      %v638 = vmul.f32 1.0, %v637
      %v639 = vrcp.pop %v619
      %v640 = vmul.f32 %v619, %v639
      %v641 = vsub.f32 1.0, %v640
      %v642 = vmul.f32 %v639, %v641
      %v643 = vadd.f32 %v639, %v642
      %vm644 = vweird.f32 %v619
      %vm645 = vweird.f32 %v639
      %vm646 = vmor %vm644, %vm645
      %v647 = vsel %vm646, %v639, %v643
      %v648 = vand.u32 2147483647, %v619
      %vm649 = vcmp.eq.f32.partialorder %v648, 8.507059e+37
      %v650 = vand.u32 %v619, 2147483648
      %v651 = vor.u32 1.1754944e-38, %v650
      %v652 = vsel %vm649, %v651, %v647
      %v653 = vmul.f32 1.0, %v652
      %v654 = vrcp.pop %v620
      %v655 = vmul.f32 %v620, %v654
      %v656 = vsub.f32 1.0, %v655
      %v657 = vmul.f32 %v654, %v656
      %v658 = vadd.f32 %v654, %v657
      %vm659 = vweird.f32 %v620
      %vm660 = vweird.f32 %v654
      %vm661 = vmor %vm659, %vm660
      %v662 = vsel %vm661, %v654, %v658
      %v663 = vand.u32 2147483647, %v620
      %vm664 = vcmp.eq.f32.partialorder %v663, 8.507059e+37
      %v665 = vand.u32 %v620, 2147483648
      %v666 = vor.u32 1.1754944e-38, %v665
      %v667 = vsel %vm664, %v666, %v662
      %v668 = vmul.f32 1.0, %v667
      %v669 = vrcp.pop %v621
      %v670 = vmul.f32 %v621, %v669
      %v671 = vsub.f32 1.0, %v670
      %v672 = vmul.f32 %v669, %v671
      %v673 = vadd.f32 %v669, %v672
      %vm674 = vweird.f32 %v621
      %vm675 = vweird.f32 %v669
      %vm676 = vmor %vm674, %vm675
      %v677 = vsel %vm676, %v669, %v673
      %v678 = vand.u32 2147483647, %v621
      %vm679 = vcmp.eq.f32.partialorder %v678, 8.507059e+37
      %v680 = vand.u32 %v621, 2147483648
      %v681 = vor.u32 1.1754944e-38, %v680
      %v682 = vsel %vm679, %v681, %v677
      %v683 = vmul.f32 1.0, %v682
      %v684 = vrcp.pop %v622
      %v685 = vmul.f32 %v622, %v684
      %v686 = vsub.f32 1.0, %v685
      %v687 = vmul.f32 %v684, %v686
      %v688 = vadd.f32 %v684, %v687
      %vm689 = vweird.f32 %v622
      %vm690 = vweird.f32 %v684
      %vm691 = vmor %vm689, %vm690
      %v692 = vsel %vm691, %v684, %v688
      %v693 = vand.u32 2147483647, %v622
      %vm694 = vcmp.eq.f32.partialorder %v693, 8.507059e+37
      %v695 = vand.u32 %v622, 2147483648
      %v696 = vor.u32 1.1754944e-38, %v695
      %v697 = vsel %vm694, %v696, %v692
      %v698 = vmul.f32 1.0, %v697
      %v699 = vrcp.pop %v623
      %v700 = vmul.f32 %v623, %v699
      %v701 = vsub.f32 1.0, %v700
      %v702 = vmul.f32 %v699, %v701
      %v703 = vadd.f32 %v699, %v702
      %vm704 = vweird.f32 %v623
      %vm705 = vweird.f32 %v699
      %vm706 = vmor %vm704, %vm705
      %v707 = vsel %vm706, %v699, %v703
      %v708 = vand.u32 2147483647, %v623
      %vm709 = vcmp.eq.f32.partialorder %v708, 8.507059e+37
      %v710 = vand.u32 %v623, 2147483648
      %v711 = vor.u32 1.1754944e-38, %v710
      %v712 = vsel %vm709, %v711, %v707
      %v713 = vmul.f32 1.0, %v712
      %v714 = vtanh.pop %v595
      %v715 = vtanh.pop %v599
      %v717 = vrot.slane %v504, 7
      %v720 = vmul.f32 %v653, %v717
      %v721 = vmul.f32 %v698, %v504
      %v722 = vmul.f32 %v638, %v714
      %v723 = vmul.f32 %v683, %v715
      %v724 = vadd.f32 %v720, %v722
      %v725 = vadd.f32 %v721, %v723
      %v726 = vtanh.pop %v724
      %v727 = vtanh.pop %v725
      %v728 = vmul.f32 %v668, %v726
      %v729 = vmul.f32 %v713, %v727
      %s730 = sadd.s32 %s53, 1
      %v731 = vstv %s730
      %vm732 = vcmp.lt.s32.totalorder %v731, %v71
      %v733 = vsel %vm732, 1, 0
      %734 = vset.pattern.permute.xlu0 0
      %735 = vperm.xlu0 %734, %v733
      %v736 = vpop.permute.xlu0 %735
      %vm737 = vcmp.eq.s32.totalorder %v736, 1
      %v740 = vrot.slane %v728, 1
      %v741 = vsel %vm495, %v729, %v740
      %v743 = vsel %vm737, %v741, %v498
      %v746 = vrot.slane %v724, 1
      %v747 = vsel %vm495, %v725, %v746
      %v749 = vsel %vm737, %v747, %v504
      %v750 = vsel %vm737, %v741, 0.0
      %v752 = vrot.slane %v750, 1
      %754 = vst [vmem:[#allocation9 + $0x1] sm:$0x1] %v750
      %755 = vst [vmem:[#allocation9 + $0x9] sm:$0x1] %v752
      %v756 = vld [vmem:[#allocation4] sm:$0x22]
      %v757 = vld [vmem:[#allocation4 + $0x8] sm:$0x22]
      %v758 = vld [vmem:[#allocation4 + $0x10] sm:$0x22]
      %v759 = vld [vmem:[#allocation4 + $0x18] sm:$0x22]
      %v760 = vpack.c.bf16 %v743, %v743
      %761 = vmatpush.bf16.msra.mxu0 %v235
      %762 = vmatpush.bf16.msra.mxu0 %v231
      %763 = vmatpush.bf16.msra.mxu0 %v227
      %764 = vmatpush.bf16.msra.mxu0 %v223
      %765 = vmatpush.bf16.msra.mxu0 %v219
      %766 = vmatpush.bf16.msra.mxu0 %v215
      %767 = vmatpush.bf16.msra.mxu0 %v211
      %768 = vmatpush.bf16.msra.mxu0 %v207
      %769 = vmatmul.bf16.gmra.mxu0 %v760
      %v770 = vpop.f32.mrf.mxu0
      %v771 = vadd.f32 0.0, %v770
      %v772 = vpop.f32.mrf.mxu0
      %773 = vdwg.mxu0
      %774 = vmatpush.bf16.msra.mxu0 %v236
      %775 = vmatpush.bf16.msra.mxu0 %v232
      %776 = vmatpush.bf16.msra.mxu0 %v228
      %777 = vmatpush.bf16.msra.mxu0 %v224
      %778 = vmatpush.bf16.msra.mxu0 %v220
      %779 = vmatpush.bf16.msra.mxu0 %v216
      %780 = vmatpush.bf16.msra.mxu0 %v212
      %781 = vmatpush.bf16.msra.mxu0 %v208
      %782 = vmatmul.bf16.gmra.mxu0 %v760
      %v783 = vpop.f32.mrf.mxu0
      %v784 = vadd.f32 0.0, %v783
      %v785 = vpop.f32.mrf.mxu0
      %786 = vdwg.mxu0
      %787 = vmatpush.bf16.msra.mxu0 %v237
      %788 = vmatpush.bf16.msra.mxu0 %v233
      %789 = vmatpush.bf16.msra.mxu0 %v229
      %790 = vmatpush.bf16.msra.mxu0 %v225
      %791 = vmatpush.bf16.msra.mxu0 %v221
      %792 = vmatpush.bf16.msra.mxu0 %v217
      %793 = vmatpush.bf16.msra.mxu0 %v213
      %794 = vmatpush.bf16.msra.mxu0 %v209
      %795 = vmatmul.bf16.gmra.mxu0 %v760
      %v796 = vpop.f32.mrf.mxu0
      %v797 = vadd.f32 0.0, %v796
      %v798 = vpop.f32.mrf.mxu0
      %799 = vdwg.mxu0
      %800 = vmatpush.bf16.msra.mxu0 %v238
      %801 = vmatpush.bf16.msra.mxu0 %v234
      %802 = vmatpush.bf16.msra.mxu0 %v230
      %803 = vmatpush.bf16.msra.mxu0 %v226
      %804 = vmatpush.bf16.msra.mxu0 %v222
      %805 = vmatpush.bf16.msra.mxu0 %v218
      %806 = vmatpush.bf16.msra.mxu0 %v214
      %807 = vmatpush.bf16.msra.mxu0 %v210
      %808 = vmatmul.bf16.gmra.mxu0 %v760
      %v809 = vpop.f32.mrf.mxu0
      %v810 = vadd.f32 0.0, %v809
      %v811 = vpop.f32.mrf.mxu0
      %812 = vdwg.mxu0
      %v813 = vunpack.c.l.bf16 %v756
      %v814 = vunpack.c.h.bf16 %v756
      %v815 = vunpack.c.l.bf16 %v757
      %v816 = vunpack.c.h.bf16 %v757
      %v817 = vunpack.c.l.bf16 %v758
      %v818 = vunpack.c.h.bf16 %v758
      %v819 = vunpack.c.l.bf16 %v759
      %v820 = vunpack.c.h.bf16 %v759
      %v825 = vrot.slane %v771, 6
      %v826 = vrot.slane %v784, 6
      %v827 = vrot.slane %v797, 6
      %v828 = vrot.slane %v810, 6
      %v829 = vrot.slane %v771, 7
      %v830 = vrot.slane %v784, 7
      %v831 = vrot.slane %v797, 7
      %v832 = vrot.slane %v810, 7
      %v841 = vadd.f32 %v813, %v825
      %v842 = vadd.f32 %v814, %v826
      %v843 = vadd.f32 %v815, %v827
      %v844 = vadd.f32 %v816, %v828
      %v845 = vadd.f32 %v817, %v829
      %v846 = vadd.f32 %v818, %v830
      %v847 = vadd.f32 %v819, %v831
      %v848 = vadd.f32 %v820, %v832
      %v849 = vxor.u32 %v841, 2147483648
      %v850 = vxor.u32 %v842, 2147483648
      %v851 = vxor.u32 %v843, 2147483648
      %v852 = vxor.u32 %v845, 2147483648
      %v853 = vxor.u32 %v846, 2147483648
      %v854 = vxor.u32 %v847, 2147483648
      %v855 = vmul.f32 %v849, 1.442695
      %v856 = vpow.pop %v855
      %v857 = vmul.f32 %v850, 1.442695
      %v858 = vpow.pop %v857
      %v859 = vmul.f32 %v851, 1.442695
      %v860 = vpow.pop %v859
      %v861 = vmul.f32 %v852, 1.442695
      %v862 = vpow.pop %v861
      %v863 = vmul.f32 %v853, 1.442695
      %v864 = vpow.pop %v863
      %v865 = vmul.f32 %v854, 1.442695
      %v866 = vpow.pop %v865
      %v867 = vadd.f32 %v856, 1.0
      %v868 = vadd.f32 %v858, 1.0
      %v869 = vadd.f32 %v860, 1.0
      %v870 = vadd.f32 %v862, 1.0
      %v871 = vadd.f32 %v864, 1.0
      %v872 = vadd.f32 %v866, 1.0
      %v873 = vrcp.pop %v867
      %v874 = vmul.f32 %v867, %v873
      %v875 = vsub.f32 1.0, %v874
      %v876 = vmul.f32 %v873, %v875
      %v877 = vadd.f32 %v873, %v876
      %vm878 = vweird.f32 %v867
      %vm879 = vweird.f32 %v873
      %vm880 = vmor %vm878, %vm879
      %v881 = vsel %vm880, %v873, %v877
      %v882 = vand.u32 2147483647, %v867
      %vm883 = vcmp.eq.f32.partialorder %v882, 8.507059e+37
      %v884 = vand.u32 %v867, 2147483648
      %v885 = vor.u32 1.1754944e-38, %v884
      %v886 = vsel %vm883, %v885, %v881
      %v887 = vmul.f32 1.0, %v886
      %v888 = vrcp.pop %v868
      %v889 = vmul.f32 %v868, %v888
      %v890 = vsub.f32 1.0, %v889
      %v891 = vmul.f32 %v888, %v890
      %v892 = vadd.f32 %v888, %v891
      %vm893 = vweird.f32 %v868
      %vm894 = vweird.f32 %v888
      %vm895 = vmor %vm893, %vm894
      %v896 = vsel %vm895, %v888, %v892
      %v897 = vand.u32 2147483647, %v868
      %vm898 = vcmp.eq.f32.partialorder %v897, 8.507059e+37
      %v899 = vand.u32 %v868, 2147483648
      %v900 = vor.u32 1.1754944e-38, %v899
      %v901 = vsel %vm898, %v900, %v896
      %v902 = vmul.f32 1.0, %v901
      %v903 = vrcp.pop %v869
      %v904 = vmul.f32 %v869, %v903
      %v905 = vsub.f32 1.0, %v904
      %v906 = vmul.f32 %v903, %v905
      %v907 = vadd.f32 %v903, %v906
      %vm908 = vweird.f32 %v869
      %vm909 = vweird.f32 %v903
      %vm910 = vmor %vm908, %vm909
      %v911 = vsel %vm910, %v903, %v907
      %v912 = vand.u32 2147483647, %v869
      %vm913 = vcmp.eq.f32.partialorder %v912, 8.507059e+37
      %v914 = vand.u32 %v869, 2147483648
      %v915 = vor.u32 1.1754944e-38, %v914
      %v916 = vsel %vm913, %v915, %v911
      %v917 = vmul.f32 1.0, %v916
      %v918 = vrcp.pop %v870
      %v919 = vmul.f32 %v870, %v918
      %v920 = vsub.f32 1.0, %v919
      %v921 = vmul.f32 %v918, %v920
      %v922 = vadd.f32 %v918, %v921
      %vm923 = vweird.f32 %v870
      %vm924 = vweird.f32 %v918
      %vm925 = vmor %vm923, %vm924
      %v926 = vsel %vm925, %v918, %v922
      %v927 = vand.u32 2147483647, %v870
      %vm928 = vcmp.eq.f32.partialorder %v927, 8.507059e+37
      %v929 = vand.u32 %v870, 2147483648
      %v930 = vor.u32 1.1754944e-38, %v929
      %v931 = vsel %vm928, %v930, %v926
      %v932 = vmul.f32 1.0, %v931
      %v933 = vrcp.pop %v871
      %v934 = vmul.f32 %v871, %v933
      %v935 = vsub.f32 1.0, %v934
      %v936 = vmul.f32 %v933, %v935
      %v937 = vadd.f32 %v933, %v936
      %vm938 = vweird.f32 %v871
      %vm939 = vweird.f32 %v933
      %vm940 = vmor %vm938, %vm939
      %v941 = vsel %vm940, %v933, %v937
      %v942 = vand.u32 2147483647, %v871
      %vm943 = vcmp.eq.f32.partialorder %v942, 8.507059e+37
      %v944 = vand.u32 %v871, 2147483648
      %v945 = vor.u32 1.1754944e-38, %v944
      %v946 = vsel %vm943, %v945, %v941
      %v947 = vmul.f32 1.0, %v946
      %v948 = vrcp.pop %v872
      %v949 = vmul.f32 %v872, %v948
      %v950 = vsub.f32 1.0, %v949
      %v951 = vmul.f32 %v948, %v950
      %v952 = vadd.f32 %v948, %v951
      %vm953 = vweird.f32 %v872
      %vm954 = vweird.f32 %v948
      %vm955 = vmor %vm953, %vm954
      %v956 = vsel %vm955, %v948, %v952
      %v957 = vand.u32 2147483647, %v872
      %vm958 = vcmp.eq.f32.partialorder %v957, 8.507059e+37
      %v959 = vand.u32 %v872, 2147483648
      %v960 = vor.u32 1.1754944e-38, %v959
      %v961 = vsel %vm958, %v960, %v956
      %v962 = vmul.f32 1.0, %v961
      %v963 = vtanh.pop %v844
      %v964 = vtanh.pop %v848
      %v966 = vrot.slane %v749, 6
      %v967 = vrot.slane %v749, 7
      %v970 = vmul.f32 %v902, %v966
      %v971 = vmul.f32 %v947, %v967
      %v972 = vmul.f32 %v887, %v963
      %v973 = vmul.f32 %v932, %v964
      %v974 = vadd.f32 %v970, %v972
      %v975 = vadd.f32 %v971, %v973
      %v976 = vtanh.pop %v974
      %v977 = vtanh.pop %v975
      %v978 = vmul.f32 %v917, %v976
      %v979 = vmul.f32 %v962, %v977
      %s980 = sadd.s32 %s53, 2
      %v981 = vstv %s980
      %vm982 = vcmp.lt.s32.totalorder %v981, %v71
      %v983 = vsel %vm982, 1, 0
      %984 = vset.pattern.permute.xlu0 0
      %985 = vperm.xlu0 %984, %v983
      %v986 = vpop.permute.xlu0 %985
      %vm987 = vcmp.eq.s32.totalorder %v986, 1
      %v990 = vrot.slane %v978, 2
      %v991 = vrot.slane %v979, 1
      %v992 = vsel %vm495, %v991, %v990
      %v994 = vsel %vm987, %v992, %v743
      %v997 = vrot.slane %v974, 2
      %v998 = vrot.slane %v975, 1
      %v999 = vsel %vm495, %v998, %v997
      %v1001 = vsel %vm987, %v999, %v749
      %v1002 = vsel %vm987, %v992, 0.0
      %v1004 = vrot.slane %v1002, 1
      %1006 = vst [vmem:[#allocation9 + $0x2] sm:$0x1] %v1002
      %1007 = vst [vmem:[#allocation9 + $0xa] sm:$0x1] %v1004
      %v1008 = vld [vmem:[#allocation4] sm:$0x22]
      %v1009 = vld [vmem:[#allocation4 + $0x8] sm:$0x22]
      %v1010 = vld [vmem:[#allocation4 + $0x10] sm:$0x22]
      %v1011 = vld [vmem:[#allocation4 + $0x18] sm:$0x22]
      %v1012 = vpack.c.bf16 %v994, %v994
      %1013 = vmatpush.bf16.msra.mxu0 %v235
      %1014 = vmatpush.bf16.msra.mxu0 %v231
      %1015 = vmatpush.bf16.msra.mxu0 %v227
      %1016 = vmatpush.bf16.msra.mxu0 %v223
      %1017 = vmatpush.bf16.msra.mxu0 %v219
      %1018 = vmatpush.bf16.msra.mxu0 %v215
      %1019 = vmatpush.bf16.msra.mxu0 %v211
      %1020 = vmatpush.bf16.msra.mxu0 %v207
      %1021 = vmatmul.bf16.gmra.mxu0 %v1012
      %v1022 = vpop.f32.mrf.mxu0
      %v1023 = vadd.f32 0.0, %v1022
      %v1024 = vpop.f32.mrf.mxu0
      %1025 = vdwg.mxu0
      %1026 = vmatpush.bf16.msra.mxu0 %v236
      %1027 = vmatpush.bf16.msra.mxu0 %v232
      %1028 = vmatpush.bf16.msra.mxu0 %v228
      %1029 = vmatpush.bf16.msra.mxu0 %v224
      %1030 = vmatpush.bf16.msra.mxu0 %v220
      %1031 = vmatpush.bf16.msra.mxu0 %v216
      %1032 = vmatpush.bf16.msra.mxu0 %v212
      %1033 = vmatpush.bf16.msra.mxu0 %v208
      %1034 = vmatmul.bf16.gmra.mxu0 %v1012
      %v1035 = vpop.f32.mrf.mxu0
      %v1036 = vadd.f32 0.0, %v1035
      %v1037 = vpop.f32.mrf.mxu0
      %1038 = vdwg.mxu0
      %1039 = vmatpush.bf16.msra.mxu0 %v237
      %1040 = vmatpush.bf16.msra.mxu0 %v233
      %1041 = vmatpush.bf16.msra.mxu0 %v229
      %1042 = vmatpush.bf16.msra.mxu0 %v225
      %1043 = vmatpush.bf16.msra.mxu0 %v221
      %1044 = vmatpush.bf16.msra.mxu0 %v217
      %1045 = vmatpush.bf16.msra.mxu0 %v213
      %1046 = vmatpush.bf16.msra.mxu0 %v209
      %1047 = vmatmul.bf16.gmra.mxu0 %v1012
      %v1048 = vpop.f32.mrf.mxu0
      %v1049 = vadd.f32 0.0, %v1048
      %v1050 = vpop.f32.mrf.mxu0
      %1051 = vdwg.mxu0
      %1052 = vmatpush.bf16.msra.mxu0 %v238
      %1053 = vmatpush.bf16.msra.mxu0 %v234
      %1054 = vmatpush.bf16.msra.mxu0 %v230
      %1055 = vmatpush.bf16.msra.mxu0 %v226
      %1056 = vmatpush.bf16.msra.mxu0 %v222
      %1057 = vmatpush.bf16.msra.mxu0 %v218
      %1058 = vmatpush.bf16.msra.mxu0 %v214
      %1059 = vmatpush.bf16.msra.mxu0 %v210
      %1060 = vmatmul.bf16.gmra.mxu0 %v1012
      %v1061 = vpop.f32.mrf.mxu0
      %v1062 = vadd.f32 0.0, %v1061
      %v1063 = vpop.f32.mrf.mxu0
      %1064 = vdwg.mxu0
      %v1065 = vunpack.c.l.bf16 %v1008
      %v1066 = vunpack.c.h.bf16 %v1008
      %v1067 = vunpack.c.l.bf16 %v1009
      %v1068 = vunpack.c.h.bf16 %v1009
      %v1069 = vunpack.c.l.bf16 %v1010
      %v1070 = vunpack.c.h.bf16 %v1010
      %v1071 = vunpack.c.l.bf16 %v1011
      %v1072 = vunpack.c.h.bf16 %v1011
      %v1077 = vrot.slane %v1023, 5
      %v1078 = vrot.slane %v1036, 5
      %v1079 = vrot.slane %v1049, 5
      %v1080 = vrot.slane %v1062, 5
      %v1081 = vrot.slane %v1023, 6
      %v1082 = vrot.slane %v1036, 6
      %v1083 = vrot.slane %v1049, 6
      %v1084 = vrot.slane %v1062, 6
      %v1093 = vadd.f32 %v1065, %v1077
      %v1094 = vadd.f32 %v1066, %v1078
      %v1095 = vadd.f32 %v1067, %v1079
      %v1096 = vadd.f32 %v1068, %v1080
      %v1097 = vadd.f32 %v1069, %v1081
      %v1098 = vadd.f32 %v1070, %v1082
      %v1099 = vadd.f32 %v1071, %v1083
      %v1100 = vadd.f32 %v1072, %v1084
      %v1101 = vxor.u32 %v1093, 2147483648
      %v1102 = vxor.u32 %v1094, 2147483648
      %v1103 = vxor.u32 %v1095, 2147483648
      %v1104 = vxor.u32 %v1097, 2147483648
      %v1105 = vxor.u32 %v1098, 2147483648
      %v1106 = vxor.u32 %v1099, 2147483648
      %v1107 = vmul.f32 %v1101, 1.442695
      %v1108 = vpow.pop %v1107
      %v1109 = vmul.f32 %v1102, 1.442695
      %v1110 = vpow.pop %v1109
      %v1111 = vmul.f32 %v1103, 1.442695
      %v1112 = vpow.pop %v1111
      %v1113 = vmul.f32 %v1104, 1.442695
      %v1114 = vpow.pop %v1113
      %v1115 = vmul.f32 %v1105, 1.442695
      %v1116 = vpow.pop %v1115
      %v1117 = vmul.f32 %v1106, 1.442695
      %v1118 = vpow.pop %v1117
      %v1119 = vadd.f32 %v1108, 1.0
      %v1120 = vadd.f32 %v1110, 1.0
      %v1121 = vadd.f32 %v1112, 1.0
      %v1122 = vadd.f32 %v1114, 1.0
      %v1123 = vadd.f32 %v1116, 1.0
      %v1124 = vadd.f32 %v1118, 1.0
      %v1125 = vrcp.pop %v1119
      %v1126 = vmul.f32 %v1119, %v1125
      %v1127 = vsub.f32 1.0, %v1126
      %v1128 = vmul.f32 %v1125, %v1127
      %v1129 = vadd.f32 %v1125, %v1128
      %vm1130 = vweird.f32 %v1119
      %vm1131 = vweird.f32 %v1125
      %vm1132 = vmor %vm1130, %vm1131
      %v1133 = vsel %vm1132, %v1125, %v1129
      %v1134 = vand.u32 2147483647, %v1119
      %vm1135 = vcmp.eq.f32.partialorder %v1134, 8.507059e+37
      %v1136 = vand.u32 %v1119, 2147483648
      %v1137 = vor.u32 1.1754944e-38, %v1136
      %v1138 = vsel %vm1135, %v1137, %v1133
      %v1139 = vmul.f32 1.0, %v1138
      %v1140 = vrcp.pop %v1120
      %v1141 = vmul.f32 %v1120, %v1140
      %v1142 = vsub.f32 1.0, %v1141
      %v1143 = vmul.f32 %v1140, %v1142
      %v1144 = vadd.f32 %v1140, %v1143
      %vm1145 = vweird.f32 %v1120
      %vm1146 = vweird.f32 %v1140
      %vm1147 = vmor %vm1145, %vm1146
      %v1148 = vsel %vm1147, %v1140, %v1144
      %v1149 = vand.u32 2147483647, %v1120
      %vm1150 = vcmp.eq.f32.partialorder %v1149, 8.507059e+37
      %v1151 = vand.u32 %v1120, 2147483648
      %v1152 = vor.u32 1.1754944e-38, %v1151
      %v1153 = vsel %vm1150, %v1152, %v1148
      %v1154 = vmul.f32 1.0, %v1153
      %v1155 = vrcp.pop %v1121
      %v1156 = vmul.f32 %v1121, %v1155
      %v1157 = vsub.f32 1.0, %v1156
      %v1158 = vmul.f32 %v1155, %v1157
      %v1159 = vadd.f32 %v1155, %v1158
      %vm1160 = vweird.f32 %v1121
      %vm1161 = vweird.f32 %v1155
      %vm1162 = vmor %vm1160, %vm1161
      %v1163 = vsel %vm1162, %v1155, %v1159
      %v1164 = vand.u32 2147483647, %v1121
      %vm1165 = vcmp.eq.f32.partialorder %v1164, 8.507059e+37
      %v1166 = vand.u32 %v1121, 2147483648
      %v1167 = vor.u32 1.1754944e-38, %v1166
      %v1168 = vsel %vm1165, %v1167, %v1163
      %v1169 = vmul.f32 1.0, %v1168
      %v1170 = vrcp.pop %v1122
      %v1171 = vmul.f32 %v1122, %v1170
      %v1172 = vsub.f32 1.0, %v1171
      %v1173 = vmul.f32 %v1170, %v1172
      %v1174 = vadd.f32 %v1170, %v1173
      %vm1175 = vweird.f32 %v1122
      %vm1176 = vweird.f32 %v1170
      %vm1177 = vmor %vm1175, %vm1176
      %v1178 = vsel %vm1177, %v1170, %v1174
      %v1179 = vand.u32 2147483647, %v1122
      %vm1180 = vcmp.eq.f32.partialorder %v1179, 8.507059e+37
      %v1181 = vand.u32 %v1122, 2147483648
      %v1182 = vor.u32 1.1754944e-38, %v1181
      %v1183 = vsel %vm1180, %v1182, %v1178
      %v1184 = vmul.f32 1.0, %v1183
      %v1185 = vrcp.pop %v1123
      %v1186 = vmul.f32 %v1123, %v1185
      %v1187 = vsub.f32 1.0, %v1186
      %v1188 = vmul.f32 %v1185, %v1187
      %v1189 = vadd.f32 %v1185, %v1188
      %vm1190 = vweird.f32 %v1123
      %vm1191 = vweird.f32 %v1185
      %vm1192 = vmor %vm1190, %vm1191
      %v1193 = vsel %vm1192, %v1185, %v1189
      %v1194 = vand.u32 2147483647, %v1123
      %vm1195 = vcmp.eq.f32.partialorder %v1194, 8.507059e+37
      %v1196 = vand.u32 %v1123, 2147483648
      %v1197 = vor.u32 1.1754944e-38, %v1196
      %v1198 = vsel %vm1195, %v1197, %v1193
      %v1199 = vmul.f32 1.0, %v1198
      %v1200 = vrcp.pop %v1124
      %v1201 = vmul.f32 %v1124, %v1200
      %v1202 = vsub.f32 1.0, %v1201
      %v1203 = vmul.f32 %v1200, %v1202
      %v1204 = vadd.f32 %v1200, %v1203
      %vm1205 = vweird.f32 %v1124
      %vm1206 = vweird.f32 %v1200
      %vm1207 = vmor %vm1205, %vm1206
      %v1208 = vsel %vm1207, %v1200, %v1204
      %v1209 = vand.u32 2147483647, %v1124
      %vm1210 = vcmp.eq.f32.partialorder %v1209, 8.507059e+37
      %v1211 = vand.u32 %v1124, 2147483648
      %v1212 = vor.u32 1.1754944e-38, %v1211
      %v1213 = vsel %vm1210, %v1212, %v1208
      %v1214 = vmul.f32 1.0, %v1213
      %v1215 = vtanh.pop %v1096
      %v1216 = vtanh.pop %v1100
      %v1218 = vrot.slane %v1001, 5
      %v1219 = vrot.slane %v1001, 6
      %v1222 = vmul.f32 %v1154, %v1218
      %v1223 = vmul.f32 %v1199, %v1219
      %v1224 = vmul.f32 %v1139, %v1215
      %v1225 = vmul.f32 %v1184, %v1216
      %v1226 = vadd.f32 %v1222, %v1224
      %v1227 = vadd.f32 %v1223, %v1225
      %v1228 = vtanh.pop %v1226
      %v1229 = vtanh.pop %v1227
      %v1230 = vmul.f32 %v1169, %v1228
      %v1231 = vmul.f32 %v1214, %v1229
      %s1232 = sadd.s32 %s53, 3
      %v1233 = vstv %s1232
      %vm1234 = vcmp.lt.s32.totalorder %v1233, %v71
      %v1235 = vsel %vm1234, 1, 0
      %1236 = vset.pattern.permute.xlu0 0
      %1237 = vperm.xlu0 %1236, %v1235
      %v1238 = vpop.permute.xlu0 %1237
      %vm1239 = vcmp.eq.s32.totalorder %v1238, 1
      %v1242 = vrot.slane %v1230, 3
      %v1243 = vrot.slane %v1231, 2
      %v1244 = vsel %vm495, %v1243, %v1242
      %v1246 = vsel %vm1239, %v1244, %v994
      %v1249 = vrot.slane %v1226, 3
      %v1250 = vrot.slane %v1227, 2
      %v1251 = vsel %vm495, %v1250, %v1249
      %v1253 = vsel %vm1239, %v1251, %v1001
      %v1254 = vsel %vm1239, %v1244, 0.0
      %v1256 = vrot.slane %v1254, 1
      %1258 = vst [vmem:[#allocation9 + $0x3] sm:$0x1] %v1254
      %1259 = vst [vmem:[#allocation9 + $0xb] sm:$0x1] %v1256
      %v1260 = vld [vmem:[#allocation4] sm:$0x44]
      %v1261 = vld [vmem:[#allocation4 + $0x8] sm:$0x44]
      %v1262 = vld [vmem:[#allocation4 + $0x10] sm:$0x44]
      %v1263 = vld [vmem:[#allocation4 + $0x18] sm:$0x44]
      %v1264 = vpack.c.bf16 %v1246, %v1246
      %1265 = vmatpush.bf16.msra.mxu0 %v235
      %1266 = vmatpush.bf16.msra.mxu0 %v231
      %1267 = vmatpush.bf16.msra.mxu0 %v227
      %1268 = vmatpush.bf16.msra.mxu0 %v223
      %1269 = vmatpush.bf16.msra.mxu0 %v219
      %1270 = vmatpush.bf16.msra.mxu0 %v215
      %1271 = vmatpush.bf16.msra.mxu0 %v211
      %1272 = vmatpush.bf16.msra.mxu0 %v207
      %1273 = vmatmul.bf16.gmra.mxu0 %v1264
      %v1274 = vpop.f32.mrf.mxu0
      %v1275 = vadd.f32 0.0, %v1274
      %v1276 = vpop.f32.mrf.mxu0
      %1277 = vdwg.mxu0
      %1278 = vmatpush.bf16.msra.mxu0 %v236
      %1279 = vmatpush.bf16.msra.mxu0 %v232
      %1280 = vmatpush.bf16.msra.mxu0 %v228
      %1281 = vmatpush.bf16.msra.mxu0 %v224
      %1282 = vmatpush.bf16.msra.mxu0 %v220
      %1283 = vmatpush.bf16.msra.mxu0 %v216
      %1284 = vmatpush.bf16.msra.mxu0 %v212
      %1285 = vmatpush.bf16.msra.mxu0 %v208
      %1286 = vmatmul.bf16.gmra.mxu0 %v1264
      %v1287 = vpop.f32.mrf.mxu0
      %v1288 = vadd.f32 0.0, %v1287
      %v1289 = vpop.f32.mrf.mxu0
      %1290 = vdwg.mxu0
      %1291 = vmatpush.bf16.msra.mxu0 %v237
      %1292 = vmatpush.bf16.msra.mxu0 %v233
      %1293 = vmatpush.bf16.msra.mxu0 %v229
      %1294 = vmatpush.bf16.msra.mxu0 %v225
      %1295 = vmatpush.bf16.msra.mxu0 %v221
      %1296 = vmatpush.bf16.msra.mxu0 %v217
      %1297 = vmatpush.bf16.msra.mxu0 %v213
      %1298 = vmatpush.bf16.msra.mxu0 %v209
      %1299 = vmatmul.bf16.gmra.mxu0 %v1264
      %v1300 = vpop.f32.mrf.mxu0
      %v1301 = vadd.f32 0.0, %v1300
      %v1302 = vpop.f32.mrf.mxu0
      %1303 = vdwg.mxu0
      %1304 = vmatpush.bf16.msra.mxu0 %v238
      %1305 = vmatpush.bf16.msra.mxu0 %v234
      %1306 = vmatpush.bf16.msra.mxu0 %v230
      %1307 = vmatpush.bf16.msra.mxu0 %v226
      %1308 = vmatpush.bf16.msra.mxu0 %v222
      %1309 = vmatpush.bf16.msra.mxu0 %v218
      %1310 = vmatpush.bf16.msra.mxu0 %v214
      %1311 = vmatpush.bf16.msra.mxu0 %v210
      %1312 = vmatmul.bf16.gmra.mxu0 %v1264
      %v1313 = vpop.f32.mrf.mxu0
      %v1314 = vadd.f32 0.0, %v1313
      %v1315 = vpop.f32.mrf.mxu0
      %1316 = vdwg.mxu0
      %v1317 = vunpack.c.l.bf16 %v1260
      %v1318 = vunpack.c.h.bf16 %v1260
      %v1319 = vunpack.c.l.bf16 %v1261
      %v1320 = vunpack.c.h.bf16 %v1261
      %v1321 = vunpack.c.l.bf16 %v1262
      %v1322 = vunpack.c.h.bf16 %v1262
      %v1323 = vunpack.c.l.bf16 %v1263
      %v1324 = vunpack.c.h.bf16 %v1263
      %v1329 = vrot.slane %v1275, 4
      %v1330 = vrot.slane %v1288, 4
      %v1331 = vrot.slane %v1301, 4
      %v1332 = vrot.slane %v1314, 4
      %v1333 = vrot.slane %v1275, 5
      %v1334 = vrot.slane %v1288, 5
      %v1335 = vrot.slane %v1301, 5
      %v1336 = vrot.slane %v1314, 5
      %v1345 = vadd.f32 %v1317, %v1329
      %v1346 = vadd.f32 %v1318, %v1330
      %v1347 = vadd.f32 %v1319, %v1331
      %v1348 = vadd.f32 %v1320, %v1332
      %v1349 = vadd.f32 %v1321, %v1333
      %v1350 = vadd.f32 %v1322, %v1334
      %v1351 = vadd.f32 %v1323, %v1335
      %v1352 = vadd.f32 %v1324, %v1336
      %v1353 = vxor.u32 %v1345, 2147483648
      %v1354 = vxor.u32 %v1346, 2147483648
      %v1355 = vxor.u32 %v1347, 2147483648
      %v1356 = vxor.u32 %v1349, 2147483648
      %v1357 = vxor.u32 %v1350, 2147483648
      %v1358 = vxor.u32 %v1351, 2147483648
      %v1359 = vmul.f32 %v1353, 1.442695
      %v1360 = vpow.pop %v1359
      %v1361 = vmul.f32 %v1354, 1.442695
      %v1362 = vpow.pop %v1361
      %v1363 = vmul.f32 %v1355, 1.442695
      %v1364 = vpow.pop %v1363
      %v1365 = vmul.f32 %v1356, 1.442695
      %v1366 = vpow.pop %v1365
      %v1367 = vmul.f32 %v1357, 1.442695
      %v1368 = vpow.pop %v1367
      %v1369 = vmul.f32 %v1358, 1.442695
      %v1370 = vpow.pop %v1369
      %v1371 = vadd.f32 %v1360, 1.0
      %v1372 = vadd.f32 %v1362, 1.0
      %v1373 = vadd.f32 %v1364, 1.0
      %v1374 = vadd.f32 %v1366, 1.0
      %v1375 = vadd.f32 %v1368, 1.0
      %v1376 = vadd.f32 %v1370, 1.0
      %v1377 = vrcp.pop %v1371
      %v1378 = vmul.f32 %v1371, %v1377
      %v1379 = vsub.f32 1.0, %v1378
      %v1380 = vmul.f32 %v1377, %v1379
      %v1381 = vadd.f32 %v1377, %v1380
      %vm1382 = vweird.f32 %v1371
      %vm1383 = vweird.f32 %v1377
      %vm1384 = vmor %vm1382, %vm1383
      %v1385 = vsel %vm1384, %v1377, %v1381
      %v1386 = vand.u32 2147483647, %v1371
      %vm1387 = vcmp.eq.f32.partialorder %v1386, 8.507059e+37
      %v1388 = vand.u32 %v1371, 2147483648
      %v1389 = vor.u32 1.1754944e-38, %v1388
      %v1390 = vsel %vm1387, %v1389, %v1385
      %v1391 = vmul.f32 1.0, %v1390
      %v1392 = vrcp.pop %v1372
      %v1393 = vmul.f32 %v1372, %v1392
      %v1394 = vsub.f32 1.0, %v1393
      %v1395 = vmul.f32 %v1392, %v1394
      %v1396 = vadd.f32 %v1392, %v1395
      %vm1397 = vweird.f32 %v1372
      %vm1398 = vweird.f32 %v1392
      %vm1399 = vmor %vm1397, %vm1398
      %v1400 = vsel %vm1399, %v1392, %v1396
      %v1401 = vand.u32 2147483647, %v1372
      %vm1402 = vcmp.eq.f32.partialorder %v1401, 8.507059e+37
      %v1403 = vand.u32 %v1372, 2147483648
      %v1404 = vor.u32 1.1754944e-38, %v1403
      %v1405 = vsel %vm1402, %v1404, %v1400
      %v1406 = vmul.f32 1.0, %v1405
      %v1407 = vrcp.pop %v1373
      %v1408 = vmul.f32 %v1373, %v1407
      %v1409 = vsub.f32 1.0, %v1408
      %v1410 = vmul.f32 %v1407, %v1409
      %v1411 = vadd.f32 %v1407, %v1410
      %vm1412 = vweird.f32 %v1373
      %vm1413 = vweird.f32 %v1407
      %vm1414 = vmor %vm1412, %vm1413
      %v1415 = vsel %vm1414, %v1407, %v1411
      %v1416 = vand.u32 2147483647, %v1373
      %vm1417 = vcmp.eq.f32.partialorder %v1416, 8.507059e+37
      %v1418 = vand.u32 %v1373, 2147483648
      %v1419 = vor.u32 1.1754944e-38, %v1418
      %v1420 = vsel %vm1417, %v1419, %v1415
      %v1421 = vmul.f32 1.0, %v1420
      %v1422 = vrcp.pop %v1374
      %v1423 = vmul.f32 %v1374, %v1422
      %v1424 = vsub.f32 1.0, %v1423
      %v1425 = vmul.f32 %v1422, %v1424
      %v1426 = vadd.f32 %v1422, %v1425
      %vm1427 = vweird.f32 %v1374
      %vm1428 = vweird.f32 %v1422
      %vm1429 = vmor %vm1427, %vm1428
      %v1430 = vsel %vm1429, %v1422, %v1426
      %v1431 = vand.u32 2147483647, %v1374
      %vm1432 = vcmp.eq.f32.partialorder %v1431, 8.507059e+37
      %v1433 = vand.u32 %v1374, 2147483648
      %v1434 = vor.u32 1.1754944e-38, %v1433
      %v1435 = vsel %vm1432, %v1434, %v1430
      %v1436 = vmul.f32 1.0, %v1435
      %v1437 = vrcp.pop %v1375
      %v1438 = vmul.f32 %v1375, %v1437
      %v1439 = vsub.f32 1.0, %v1438
      %v1440 = vmul.f32 %v1437, %v1439
      %v1441 = vadd.f32 %v1437, %v1440
      %vm1442 = vweird.f32 %v1375
      %vm1443 = vweird.f32 %v1437
      %vm1444 = vmor %vm1442, %vm1443
      %v1445 = vsel %vm1444, %v1437, %v1441
      %v1446 = vand.u32 2147483647, %v1375
      %vm1447 = vcmp.eq.f32.partialorder %v1446, 8.507059e+37
      %v1448 = vand.u32 %v1375, 2147483648
      %v1449 = vor.u32 1.1754944e-38, %v1448
      %v1450 = vsel %vm1447, %v1449, %v1445
      %v1451 = vmul.f32 1.0, %v1450
      %v1452 = vrcp.pop %v1376
      %v1453 = vmul.f32 %v1376, %v1452
      %v1454 = vsub.f32 1.0, %v1453
      %v1455 = vmul.f32 %v1452, %v1454
      %v1456 = vadd.f32 %v1452, %v1455
      %vm1457 = vweird.f32 %v1376
      %vm1458 = vweird.f32 %v1452
      %vm1459 = vmor %vm1457, %vm1458
      %v1460 = vsel %vm1459, %v1452, %v1456
      %v1461 = vand.u32 2147483647, %v1376
      %vm1462 = vcmp.eq.f32.partialorder %v1461, 8.507059e+37
      %v1463 = vand.u32 %v1376, 2147483648
      %v1464 = vor.u32 1.1754944e-38, %v1463
      %v1465 = vsel %vm1462, %v1464, %v1460
      %v1466 = vmul.f32 1.0, %v1465
      %v1467 = vtanh.pop %v1348
      %v1468 = vtanh.pop %v1352
      %v1470 = vrot.slane %v1253, 4
      %v1471 = vrot.slane %v1253, 5
      %v1474 = vmul.f32 %v1406, %v1470
      %v1475 = vmul.f32 %v1451, %v1471
      %v1476 = vmul.f32 %v1391, %v1467
      %v1477 = vmul.f32 %v1436, %v1468
      %v1478 = vadd.f32 %v1474, %v1476
      %v1479 = vadd.f32 %v1475, %v1477
      %v1480 = vtanh.pop %v1478
      %v1481 = vtanh.pop %v1479
      %v1482 = vmul.f32 %v1421, %v1480
      %v1483 = vmul.f32 %v1466, %v1481
      %s1484 = sadd.s32 %s53, 4
      %v1485 = vstv %s1484
      %vm1486 = vcmp.lt.s32.totalorder %v1485, %v71
      %v1487 = vsel %vm1486, 1, 0
      %1488 = vset.pattern.permute.xlu0 0
      %1489 = vperm.xlu0 %1488, %v1487
      %v1490 = vpop.permute.xlu0 %1489
      %vm1491 = vcmp.eq.s32.totalorder %v1490, 1
      %v1494 = vrot.slane %v1482, 4
      %v1495 = vrot.slane %v1483, 3
      %v1496 = vsel %vm495, %v1495, %v1494
      %v1498 = vsel %vm1491, %v1496, %v1246
      %v1501 = vrot.slane %v1478, 4
      %v1502 = vrot.slane %v1479, 3
      %v1503 = vsel %vm495, %v1502, %v1501
      %v1505 = vsel %vm1491, %v1503, %v1253
      %v1506 = vsel %vm1491, %v1496, 0.0
      %v1508 = vrot.slane %v1506, 1
      %1510 = vst [vmem:[#allocation9 + $0x4] sm:$0x1] %v1506
      %1511 = vst [vmem:[#allocation9 + $0xc] sm:$0x1] %v1508
      %v1512 = vld [vmem:[#allocation4] sm:$0x44]
      %v1513 = vld [vmem:[#allocation4 + $0x8] sm:$0x44]
      %v1514 = vld [vmem:[#allocation4 + $0x10] sm:$0x44]
      %v1515 = vld [vmem:[#allocation4 + $0x18] sm:$0x44]
      %v1516 = vpack.c.bf16 %v1498, %v1498
      %1517 = vmatpush.bf16.msra.mxu0 %v235
      %1518 = vmatpush.bf16.msra.mxu0 %v231
      %1519 = vmatpush.bf16.msra.mxu0 %v227
      %1520 = vmatpush.bf16.msra.mxu0 %v223
      %1521 = vmatpush.bf16.msra.mxu0 %v219
      %1522 = vmatpush.bf16.msra.mxu0 %v215
      %1523 = vmatpush.bf16.msra.mxu0 %v211
      %1524 = vmatpush.bf16.msra.mxu0 %v207
      %1525 = vmatmul.bf16.gmra.mxu0 %v1516
      %v1526 = vpop.f32.mrf.mxu0
      %v1527 = vadd.f32 0.0, %v1526
      %v1528 = vpop.f32.mrf.mxu0
      %1529 = vdwg.mxu0
      %1530 = vmatpush.bf16.msra.mxu0 %v236
      %1531 = vmatpush.bf16.msra.mxu0 %v232
      %1532 = vmatpush.bf16.msra.mxu0 %v228
      %1533 = vmatpush.bf16.msra.mxu0 %v224
      %1534 = vmatpush.bf16.msra.mxu0 %v220
      %1535 = vmatpush.bf16.msra.mxu0 %v216
      %1536 = vmatpush.bf16.msra.mxu0 %v212
      %1537 = vmatpush.bf16.msra.mxu0 %v208
      %1538 = vmatmul.bf16.gmra.mxu0 %v1516
      %v1539 = vpop.f32.mrf.mxu0
      %v1540 = vadd.f32 0.0, %v1539
      %v1541 = vpop.f32.mrf.mxu0
      %1542 = vdwg.mxu0
      %1543 = vmatpush.bf16.msra.mxu0 %v237
      %1544 = vmatpush.bf16.msra.mxu0 %v233
      %1545 = vmatpush.bf16.msra.mxu0 %v229
      %1546 = vmatpush.bf16.msra.mxu0 %v225
      %1547 = vmatpush.bf16.msra.mxu0 %v221
      %1548 = vmatpush.bf16.msra.mxu0 %v217
      %1549 = vmatpush.bf16.msra.mxu0 %v213
      %1550 = vmatpush.bf16.msra.mxu0 %v209
      %1551 = vmatmul.bf16.gmra.mxu0 %v1516
      %v1552 = vpop.f32.mrf.mxu0
      %v1553 = vadd.f32 0.0, %v1552
      %v1554 = vpop.f32.mrf.mxu0
      %1555 = vdwg.mxu0
      %1556 = vmatpush.bf16.msra.mxu0 %v238
      %1557 = vmatpush.bf16.msra.mxu0 %v234
      %1558 = vmatpush.bf16.msra.mxu0 %v230
      %1559 = vmatpush.bf16.msra.mxu0 %v226
      %1560 = vmatpush.bf16.msra.mxu0 %v222
      %1561 = vmatpush.bf16.msra.mxu0 %v218
      %1562 = vmatpush.bf16.msra.mxu0 %v214
      %1563 = vmatpush.bf16.msra.mxu0 %v210
      %1564 = vmatmul.bf16.gmra.mxu0 %v1516
      %v1565 = vpop.f32.mrf.mxu0
      %v1566 = vadd.f32 0.0, %v1565
      %v1567 = vpop.f32.mrf.mxu0
      %1568 = vdwg.mxu0
      %v1569 = vunpack.c.l.bf16 %v1512
      %v1570 = vunpack.c.h.bf16 %v1512
      %v1571 = vunpack.c.l.bf16 %v1513
      %v1572 = vunpack.c.h.bf16 %v1513
      %v1573 = vunpack.c.l.bf16 %v1514
      %v1574 = vunpack.c.h.bf16 %v1514
      %v1575 = vunpack.c.l.bf16 %v1515
      %v1576 = vunpack.c.h.bf16 %v1515
      %v1581 = vrot.slane %v1527, 3
      %v1582 = vrot.slane %v1540, 3
      %v1583 = vrot.slane %v1553, 3
      %v1584 = vrot.slane %v1566, 3
      %v1585 = vrot.slane %v1527, 4
      %v1586 = vrot.slane %v1540, 4
      %v1587 = vrot.slane %v1553, 4
      %v1588 = vrot.slane %v1566, 4
      %v1597 = vadd.f32 %v1569, %v1581
      %v1598 = vadd.f32 %v1570, %v1582
      %v1599 = vadd.f32 %v1571, %v1583
      %v1600 = vadd.f32 %v1572, %v1584
      %v1601 = vadd.f32 %v1573, %v1585
      %v1602 = vadd.f32 %v1574, %v1586
      %v1603 = vadd.f32 %v1575, %v1587
      %v1604 = vadd.f32 %v1576, %v1588
      %v1605 = vxor.u32 %v1597, 2147483648
      %v1606 = vxor.u32 %v1598, 2147483648
      %v1607 = vxor.u32 %v1599, 2147483648
      %v1608 = vxor.u32 %v1601, 2147483648
      %v1609 = vxor.u32 %v1602, 2147483648
      %v1610 = vxor.u32 %v1603, 2147483648
      %v1611 = vmul.f32 %v1605, 1.442695
      %v1612 = vpow.pop %v1611
      %v1613 = vmul.f32 %v1606, 1.442695
      %v1614 = vpow.pop %v1613
      %v1615 = vmul.f32 %v1607, 1.442695
      %v1616 = vpow.pop %v1615
      %v1617 = vmul.f32 %v1608, 1.442695
      %v1618 = vpow.pop %v1617
      %v1619 = vmul.f32 %v1609, 1.442695
      %v1620 = vpow.pop %v1619
      %v1621 = vmul.f32 %v1610, 1.442695
      %v1622 = vpow.pop %v1621
      %v1623 = vadd.f32 %v1612, 1.0
      %v1624 = vadd.f32 %v1614, 1.0
      %v1625 = vadd.f32 %v1616, 1.0
      %v1626 = vadd.f32 %v1618, 1.0
      %v1627 = vadd.f32 %v1620, 1.0
      %v1628 = vadd.f32 %v1622, 1.0
      %v1629 = vrcp.pop %v1623
      %v1630 = vmul.f32 %v1623, %v1629
      %v1631 = vsub.f32 1.0, %v1630
      %v1632 = vmul.f32 %v1629, %v1631
      %v1633 = vadd.f32 %v1629, %v1632
      %vm1634 = vweird.f32 %v1623
      %vm1635 = vweird.f32 %v1629
      %vm1636 = vmor %vm1634, %vm1635
      %v1637 = vsel %vm1636, %v1629, %v1633
      %v1638 = vand.u32 2147483647, %v1623
      %vm1639 = vcmp.eq.f32.partialorder %v1638, 8.507059e+37
      %v1640 = vand.u32 %v1623, 2147483648
      %v1641 = vor.u32 1.1754944e-38, %v1640
      %v1642 = vsel %vm1639, %v1641, %v1637
      %v1643 = vmul.f32 1.0, %v1642
      %v1644 = vrcp.pop %v1624
      %v1645 = vmul.f32 %v1624, %v1644
      %v1646 = vsub.f32 1.0, %v1645
      %v1647 = vmul.f32 %v1644, %v1646
      %v1648 = vadd.f32 %v1644, %v1647
      %vm1649 = vweird.f32 %v1624
      %vm1650 = vweird.f32 %v1644
      %vm1651 = vmor %vm1649, %vm1650
      %v1652 = vsel %vm1651, %v1644, %v1648
      %v1653 = vand.u32 2147483647, %v1624
      %vm1654 = vcmp.eq.f32.partialorder %v1653, 8.507059e+37
      %v1655 = vand.u32 %v1624, 2147483648
      %v1656 = vor.u32 1.1754944e-38, %v1655
      %v1657 = vsel %vm1654, %v1656, %v1652
      %v1658 = vmul.f32 1.0, %v1657
      %v1659 = vrcp.pop %v1625
      %v1660 = vmul.f32 %v1625, %v1659
      %v1661 = vsub.f32 1.0, %v1660
      %v1662 = vmul.f32 %v1659, %v1661
      %v1663 = vadd.f32 %v1659, %v1662
      %vm1664 = vweird.f32 %v1625
      %vm1665 = vweird.f32 %v1659
      %vm1666 = vmor %vm1664, %vm1665
      %v1667 = vsel %vm1666, %v1659, %v1663
      %v1668 = vand.u32 2147483647, %v1625
      %vm1669 = vcmp.eq.f32.partialorder %v1668, 8.507059e+37
      %v1670 = vand.u32 %v1625, 2147483648
      %v1671 = vor.u32 1.1754944e-38, %v1670
      %v1672 = vsel %vm1669, %v1671, %v1667
      %v1673 = vmul.f32 1.0, %v1672
      %v1674 = vrcp.pop %v1626
      %v1675 = vmul.f32 %v1626, %v1674
      %v1676 = vsub.f32 1.0, %v1675
      %v1677 = vmul.f32 %v1674, %v1676
      %v1678 = vadd.f32 %v1674, %v1677
      %vm1679 = vweird.f32 %v1626
      %vm1680 = vweird.f32 %v1674
      %vm1681 = vmor %vm1679, %vm1680
      %v1682 = vsel %vm1681, %v1674, %v1678
      %v1683 = vand.u32 2147483647, %v1626
      %vm1684 = vcmp.eq.f32.partialorder %v1683, 8.507059e+37
      %v1685 = vand.u32 %v1626, 2147483648
      %v1686 = vor.u32 1.1754944e-38, %v1685
      %v1687 = vsel %vm1684, %v1686, %v1682
      %v1688 = vmul.f32 1.0, %v1687
      %v1689 = vrcp.pop %v1627
      %v1690 = vmul.f32 %v1627, %v1689
      %v1691 = vsub.f32 1.0, %v1690
      %v1692 = vmul.f32 %v1689, %v1691
      %v1693 = vadd.f32 %v1689, %v1692
      %vm1694 = vweird.f32 %v1627
      %vm1695 = vweird.f32 %v1689
      %vm1696 = vmor %vm1694, %vm1695
      %v1697 = vsel %vm1696, %v1689, %v1693
      %v1698 = vand.u32 2147483647, %v1627
      %vm1699 = vcmp.eq.f32.partialorder %v1698, 8.507059e+37
      %v1700 = vand.u32 %v1627, 2147483648
      %v1701 = vor.u32 1.1754944e-38, %v1700
      %v1702 = vsel %vm1699, %v1701, %v1697
      %v1703 = vmul.f32 1.0, %v1702
      %v1704 = vrcp.pop %v1628
      %v1705 = vmul.f32 %v1628, %v1704
      %v1706 = vsub.f32 1.0, %v1705
      %v1707 = vmul.f32 %v1704, %v1706
      %v1708 = vadd.f32 %v1704, %v1707
      %vm1709 = vweird.f32 %v1628
      %vm1710 = vweird.f32 %v1704
      %vm1711 = vmor %vm1709, %vm1710
      %v1712 = vsel %vm1711, %v1704, %v1708
      %v1713 = vand.u32 2147483647, %v1628
      %vm1714 = vcmp.eq.f32.partialorder %v1713, 8.507059e+37
      %v1715 = vand.u32 %v1628, 2147483648
      %v1716 = vor.u32 1.1754944e-38, %v1715
      %v1717 = vsel %vm1714, %v1716, %v1712
      %v1718 = vmul.f32 1.0, %v1717
      %v1719 = vtanh.pop %v1600
      %v1720 = vtanh.pop %v1604
      %v1722 = vrot.slane %v1505, 3
      %v1723 = vrot.slane %v1505, 4
      %v1726 = vmul.f32 %v1658, %v1722
      %v1727 = vmul.f32 %v1703, %v1723
      %v1728 = vmul.f32 %v1643, %v1719
      %v1729 = vmul.f32 %v1688, %v1720
      %v1730 = vadd.f32 %v1726, %v1728
      %v1731 = vadd.f32 %v1727, %v1729
      %v1732 = vtanh.pop %v1730
      %v1733 = vtanh.pop %v1731
      %v1734 = vmul.f32 %v1673, %v1732
      %v1735 = vmul.f32 %v1718, %v1733
      %s1736 = sadd.s32 %s53, 5
      %v1737 = vstv %s1736
      %vm1738 = vcmp.lt.s32.totalorder %v1737, %v71
      %v1739 = vsel %vm1738, 1, 0
      %1740 = vset.pattern.permute.xlu0 0
      %1741 = vperm.xlu0 %1740, %v1739
      %v1742 = vpop.permute.xlu0 %1741
      %vm1743 = vcmp.eq.s32.totalorder %v1742, 1
      %v1746 = vrot.slane %v1734, 5
      %v1747 = vrot.slane %v1735, 4
      %v1748 = vsel %vm495, %v1747, %v1746
      %v1750 = vsel %vm1743, %v1748, %v1498
      %v1753 = vrot.slane %v1730, 5
      %v1754 = vrot.slane %v1731, 4
      %v1755 = vsel %vm495, %v1754, %v1753
      %v1757 = vsel %vm1743, %v1755, %v1505
      %v1758 = vsel %vm1743, %v1748, 0.0
      %v1760 = vrot.slane %v1758, 1
      %1762 = vst [vmem:[#allocation9 + $0x5] sm:$0x1] %v1758
      %1763 = vst [vmem:[#allocation9 + $0xd] sm:$0x1] %v1760
      %v1764 = vld [vmem:[#allocation4] sm:$0x88]
      %v1765 = vld [vmem:[#allocation4 + $0x8] sm:$0x88]
      %v1766 = vld [vmem:[#allocation4 + $0x10] sm:$0x88]
      %v1767 = vld [vmem:[#allocation4 + $0x18] sm:$0x88]
      %v1768 = vpack.c.bf16 %v1750, %v1750
      %1769 = vmatpush.bf16.msra.mxu0 %v235
      %1770 = vmatpush.bf16.msra.mxu0 %v231
      %1771 = vmatpush.bf16.msra.mxu0 %v227
      %1772 = vmatpush.bf16.msra.mxu0 %v223
      %1773 = vmatpush.bf16.msra.mxu0 %v219
      %1774 = vmatpush.bf16.msra.mxu0 %v215
      %1775 = vmatpush.bf16.msra.mxu0 %v211
      %1776 = vmatpush.bf16.msra.mxu0 %v207
      %1777 = vmatmul.bf16.gmra.mxu0 %v1768
      %v1778 = vpop.f32.mrf.mxu0
      %v1779 = vadd.f32 0.0, %v1778
      %v1780 = vpop.f32.mrf.mxu0
      %1781 = vdwg.mxu0
      %1782 = vmatpush.bf16.msra.mxu0 %v236
      %1783 = vmatpush.bf16.msra.mxu0 %v232
      %1784 = vmatpush.bf16.msra.mxu0 %v228
      %1785 = vmatpush.bf16.msra.mxu0 %v224
      %1786 = vmatpush.bf16.msra.mxu0 %v220
      %1787 = vmatpush.bf16.msra.mxu0 %v216
      %1788 = vmatpush.bf16.msra.mxu0 %v212
      %1789 = vmatpush.bf16.msra.mxu0 %v208
      %1790 = vmatmul.bf16.gmra.mxu0 %v1768
      %v1791 = vpop.f32.mrf.mxu0
      %v1792 = vadd.f32 0.0, %v1791
      %v1793 = vpop.f32.mrf.mxu0
      %1794 = vdwg.mxu0
      %1795 = vmatpush.bf16.msra.mxu0 %v237
      %1796 = vmatpush.bf16.msra.mxu0 %v233
      %1797 = vmatpush.bf16.msra.mxu0 %v229
      %1798 = vmatpush.bf16.msra.mxu0 %v225
      %1799 = vmatpush.bf16.msra.mxu0 %v221
      %1800 = vmatpush.bf16.msra.mxu0 %v217
      %1801 = vmatpush.bf16.msra.mxu0 %v213
      %1802 = vmatpush.bf16.msra.mxu0 %v209
      %1803 = vmatmul.bf16.gmra.mxu0 %v1768
      %v1804 = vpop.f32.mrf.mxu0
      %v1805 = vadd.f32 0.0, %v1804
      %v1806 = vpop.f32.mrf.mxu0
      %1807 = vdwg.mxu0
      %1808 = vmatpush.bf16.msra.mxu0 %v238
      %1809 = vmatpush.bf16.msra.mxu0 %v234
      %1810 = vmatpush.bf16.msra.mxu0 %v230
      %1811 = vmatpush.bf16.msra.mxu0 %v226
      %1812 = vmatpush.bf16.msra.mxu0 %v222
      %1813 = vmatpush.bf16.msra.mxu0 %v218
      %1814 = vmatpush.bf16.msra.mxu0 %v214
      %1815 = vmatpush.bf16.msra.mxu0 %v210
      %1816 = vmatmul.bf16.gmra.mxu0 %v1768
      %v1817 = vpop.f32.mrf.mxu0
      %v1818 = vadd.f32 0.0, %v1817
      %v1819 = vpop.f32.mrf.mxu0
      %1820 = vdwg.mxu0
      %v1821 = vunpack.c.l.bf16 %v1764
      %v1822 = vunpack.c.h.bf16 %v1764
      %v1823 = vunpack.c.l.bf16 %v1765
      %v1824 = vunpack.c.h.bf16 %v1765
      %v1825 = vunpack.c.l.bf16 %v1766
      %v1826 = vunpack.c.h.bf16 %v1766
      %v1827 = vunpack.c.l.bf16 %v1767
      %v1828 = vunpack.c.h.bf16 %v1767
      %v1833 = vrot.slane %v1779, 2
      %v1834 = vrot.slane %v1792, 2
      %v1835 = vrot.slane %v1805, 2
      %v1836 = vrot.slane %v1818, 2
      %v1837 = vrot.slane %v1779, 3
      %v1838 = vrot.slane %v1792, 3
      %v1839 = vrot.slane %v1805, 3
      %v1840 = vrot.slane %v1818, 3
      %v1849 = vadd.f32 %v1821, %v1833
      %v1850 = vadd.f32 %v1822, %v1834
      %v1851 = vadd.f32 %v1823, %v1835
      %v1852 = vadd.f32 %v1824, %v1836
      %v1853 = vadd.f32 %v1825, %v1837
      %v1854 = vadd.f32 %v1826, %v1838
      %v1855 = vadd.f32 %v1827, %v1839
      %v1856 = vadd.f32 %v1828, %v1840
      %v1857 = vxor.u32 %v1849, 2147483648
      %v1858 = vxor.u32 %v1850, 2147483648
      %v1859 = vxor.u32 %v1851, 2147483648
      %v1860 = vxor.u32 %v1853, 2147483648
      %v1861 = vxor.u32 %v1854, 2147483648
      %v1862 = vxor.u32 %v1855, 2147483648
      %v1863 = vmul.f32 %v1857, 1.442695
      %v1864 = vpow.pop %v1863
      %v1865 = vmul.f32 %v1858, 1.442695
      %v1866 = vpow.pop %v1865
      %v1867 = vmul.f32 %v1859, 1.442695
      %v1868 = vpow.pop %v1867
      %v1869 = vmul.f32 %v1860, 1.442695
      %v1870 = vpow.pop %v1869
      %v1871 = vmul.f32 %v1861, 1.442695
      %v1872 = vpow.pop %v1871
      %v1873 = vmul.f32 %v1862, 1.442695
      %v1874 = vpow.pop %v1873
      %v1875 = vadd.f32 %v1864, 1.0
      %v1876 = vadd.f32 %v1866, 1.0
      %v1877 = vadd.f32 %v1868, 1.0
      %v1878 = vadd.f32 %v1870, 1.0
      %v1879 = vadd.f32 %v1872, 1.0
      %v1880 = vadd.f32 %v1874, 1.0
      %v1881 = vrcp.pop %v1875
      %v1882 = vmul.f32 %v1875, %v1881
      %v1883 = vsub.f32 1.0, %v1882
      %v1884 = vmul.f32 %v1881, %v1883
      %v1885 = vadd.f32 %v1881, %v1884
      %vm1886 = vweird.f32 %v1875
      %vm1887 = vweird.f32 %v1881
      %vm1888 = vmor %vm1886, %vm1887
      %v1889 = vsel %vm1888, %v1881, %v1885
      %v1890 = vand.u32 2147483647, %v1875
      %vm1891 = vcmp.eq.f32.partialorder %v1890, 8.507059e+37
      %v1892 = vand.u32 %v1875, 2147483648
      %v1893 = vor.u32 1.1754944e-38, %v1892
      %v1894 = vsel %vm1891, %v1893, %v1889
      %v1895 = vmul.f32 1.0, %v1894
      %v1896 = vrcp.pop %v1876
      %v1897 = vmul.f32 %v1876, %v1896
      %v1898 = vsub.f32 1.0, %v1897
      %v1899 = vmul.f32 %v1896, %v1898
      %v1900 = vadd.f32 %v1896, %v1899
      %vm1901 = vweird.f32 %v1876
      %vm1902 = vweird.f32 %v1896
      %vm1903 = vmor %vm1901, %vm1902
      %v1904 = vsel %vm1903, %v1896, %v1900
      %v1905 = vand.u32 2147483647, %v1876
      %vm1906 = vcmp.eq.f32.partialorder %v1905, 8.507059e+37
      %v1907 = vand.u32 %v1876, 2147483648
      %v1908 = vor.u32 1.1754944e-38, %v1907
      %v1909 = vsel %vm1906, %v1908, %v1904
      %v1910 = vmul.f32 1.0, %v1909
      %v1911 = vrcp.pop %v1877
      %v1912 = vmul.f32 %v1877, %v1911
      %v1913 = vsub.f32 1.0, %v1912
      %v1914 = vmul.f32 %v1911, %v1913
      %v1915 = vadd.f32 %v1911, %v1914
      %vm1916 = vweird.f32 %v1877
      %vm1917 = vweird.f32 %v1911
      %vm1918 = vmor %vm1916, %vm1917
      %v1919 = vsel %vm1918, %v1911, %v1915
      %v1920 = vand.u32 2147483647, %v1877
      %vm1921 = vcmp.eq.f32.partialorder %v1920, 8.507059e+37
      %v1922 = vand.u32 %v1877, 2147483648
      %v1923 = vor.u32 1.1754944e-38, %v1922
      %v1924 = vsel %vm1921, %v1923, %v1919
      %v1925 = vmul.f32 1.0, %v1924
      %v1926 = vrcp.pop %v1878
      %v1927 = vmul.f32 %v1878, %v1926
      %v1928 = vsub.f32 1.0, %v1927
      %v1929 = vmul.f32 %v1926, %v1928
      %v1930 = vadd.f32 %v1926, %v1929
      %vm1931 = vweird.f32 %v1878
      %vm1932 = vweird.f32 %v1926
      %vm1933 = vmor %vm1931, %vm1932
      %v1934 = vsel %vm1933, %v1926, %v1930
      %v1935 = vand.u32 2147483647, %v1878
      %vm1936 = vcmp.eq.f32.partialorder %v1935, 8.507059e+37
      %v1937 = vand.u32 %v1878, 2147483648
      %v1938 = vor.u32 1.1754944e-38, %v1937
      %v1939 = vsel %vm1936, %v1938, %v1934
      %v1940 = vmul.f32 1.0, %v1939
      %v1941 = vrcp.pop %v1879
      %v1942 = vmul.f32 %v1879, %v1941
      %v1943 = vsub.f32 1.0, %v1942
      %v1944 = vmul.f32 %v1941, %v1943
      %v1945 = vadd.f32 %v1941, %v1944
      %vm1946 = vweird.f32 %v1879
      %vm1947 = vweird.f32 %v1941
      %vm1948 = vmor %vm1946, %vm1947
      %v1949 = vsel %vm1948, %v1941, %v1945
      %v1950 = vand.u32 2147483647, %v1879
      %vm1951 = vcmp.eq.f32.partialorder %v1950, 8.507059e+37
      %v1952 = vand.u32 %v1879, 2147483648
      %v1953 = vor.u32 1.1754944e-38, %v1952
      %v1954 = vsel %vm1951, %v1953, %v1949
      %v1955 = vmul.f32 1.0, %v1954
      %v1956 = vrcp.pop %v1880
      %v1957 = vmul.f32 %v1880, %v1956
      %v1958 = vsub.f32 1.0, %v1957
      %v1959 = vmul.f32 %v1956, %v1958
      %v1960 = vadd.f32 %v1956, %v1959
      %vm1961 = vweird.f32 %v1880
      %vm1962 = vweird.f32 %v1956
      %vm1963 = vmor %vm1961, %vm1962
      %v1964 = vsel %vm1963, %v1956, %v1960
      %v1965 = vand.u32 2147483647, %v1880
      %vm1966 = vcmp.eq.f32.partialorder %v1965, 8.507059e+37
      %v1967 = vand.u32 %v1880, 2147483648
      %v1968 = vor.u32 1.1754944e-38, %v1967
      %v1969 = vsel %vm1966, %v1968, %v1964
      %v1970 = vmul.f32 1.0, %v1969
      %v1971 = vtanh.pop %v1852
      %v1972 = vtanh.pop %v1856
      %v1974 = vrot.slane %v1757, 2
      %v1975 = vrot.slane %v1757, 3
      %v1978 = vmul.f32 %v1910, %v1974
      %v1979 = vmul.f32 %v1955, %v1975
      %v1980 = vmul.f32 %v1895, %v1971
      %v1981 = vmul.f32 %v1940, %v1972
      %v1982 = vadd.f32 %v1978, %v1980
      %v1983 = vadd.f32 %v1979, %v1981
      %v1984 = vtanh.pop %v1982
      %v1985 = vtanh.pop %v1983
      %v1986 = vmul.f32 %v1925, %v1984
      %v1987 = vmul.f32 %v1970, %v1985
      %s1988 = sadd.s32 %s53, 6
      %v1989 = vstv %s1988
      %vm1990 = vcmp.lt.s32.totalorder %v1989, %v71
      %v1991 = vsel %vm1990, 1, 0
      %1992 = vset.pattern.permute.xlu0 0
      %1993 = vperm.xlu0 %1992, %v1991
      %v1994 = vpop.permute.xlu0 %1993
      %vm1995 = vcmp.eq.s32.totalorder %v1994, 1
      %v1998 = vrot.slane %v1986, 6
      %v1999 = vrot.slane %v1987, 5
      %v2000 = vsel %vm495, %v1999, %v1998
      %v2002 = vsel %vm1995, %v2000, %v1750
      %v2005 = vrot.slane %v1982, 6
      %v2006 = vrot.slane %v1983, 5
      %v2007 = vsel %vm495, %v2006, %v2005
      %v2009 = vsel %vm1995, %v2007, %v1757
      %v2010 = vsel %vm1995, %v2000, 0.0
      %v2012 = vrot.slane %v2010, 1
      %2014 = vst [vmem:[#allocation9 + $0x6] sm:$0x1] %v2010
      %2015 = vst [vmem:[#allocation9 + $0xe] sm:$0x1] %v2012
      %v2016 = vld [vmem:[#allocation4] sm:$0x88]
      %v2017 = vld [vmem:[#allocation4 + $0x8] sm:$0x88]
      %v2018 = vld [vmem:[#allocation4 + $0x10] sm:$0x88]
      %v2019 = vld [vmem:[#allocation4 + $0x18] sm:$0x88]
      %v2020 = vpack.c.bf16 %v2002, %v2002
      %2021 = vmatpush.bf16.msra.mxu0 %v235
      %2022 = vmatpush.bf16.msra.mxu0 %v231
      %2023 = vmatpush.bf16.msra.mxu0 %v227
      %2024 = vmatpush.bf16.msra.mxu0 %v223
      %2025 = vmatpush.bf16.msra.mxu0 %v219
      %2026 = vmatpush.bf16.msra.mxu0 %v215
      %2027 = vmatpush.bf16.msra.mxu0 %v211
      %2028 = vmatpush.bf16.msra.mxu0 %v207
      %2029 = vmatmul.bf16.gmra.mxu0 %v2020
      %v2030 = vpop.f32.mrf.mxu0
      %v2031 = vadd.f32 0.0, %v2030
      %v2032 = vpop.f32.mrf.mxu0
      %2033 = vdwg.mxu0
      %2034 = vmatpush.bf16.msra.mxu0 %v236
      %2035 = vmatpush.bf16.msra.mxu0 %v232
      %2036 = vmatpush.bf16.msra.mxu0 %v228
      %2037 = vmatpush.bf16.msra.mxu0 %v224
      %2038 = vmatpush.bf16.msra.mxu0 %v220
      %2039 = vmatpush.bf16.msra.mxu0 %v216
      %2040 = vmatpush.bf16.msra.mxu0 %v212
      %2041 = vmatpush.bf16.msra.mxu0 %v208
      %2042 = vmatmul.bf16.gmra.mxu0 %v2020
      %v2043 = vpop.f32.mrf.mxu0
      %v2044 = vadd.f32 0.0, %v2043
      %v2045 = vpop.f32.mrf.mxu0
      %2046 = vdwg.mxu0
      %2047 = vmatpush.bf16.msra.mxu0 %v237
      %2048 = vmatpush.bf16.msra.mxu0 %v233
      %2049 = vmatpush.bf16.msra.mxu0 %v229
      %2050 = vmatpush.bf16.msra.mxu0 %v225
      %2051 = vmatpush.bf16.msra.mxu0 %v221
      %2052 = vmatpush.bf16.msra.mxu0 %v217
      %2053 = vmatpush.bf16.msra.mxu0 %v213
      %2054 = vmatpush.bf16.msra.mxu0 %v209
      %2055 = vmatmul.bf16.gmra.mxu0 %v2020
      %v2056 = vpop.f32.mrf.mxu0
      %v2057 = vadd.f32 0.0, %v2056
      %v2058 = vpop.f32.mrf.mxu0
      %2059 = vdwg.mxu0
      %2060 = vmatpush.bf16.msra.mxu0 %v238
      %2061 = vmatpush.bf16.msra.mxu0 %v234
      %2062 = vmatpush.bf16.msra.mxu0 %v230
      %2063 = vmatpush.bf16.msra.mxu0 %v226
      %2064 = vmatpush.bf16.msra.mxu0 %v222
      %2065 = vmatpush.bf16.msra.mxu0 %v218
      %2066 = vmatpush.bf16.msra.mxu0 %v214
      %2067 = vmatpush.bf16.msra.mxu0 %v210
      %2068 = vmatmul.bf16.gmra.mxu0 %v2020
      %v2069 = vpop.f32.mrf.mxu0
      %v2070 = vadd.f32 0.0, %v2069
      %v2071 = vpop.f32.mrf.mxu0
      %2072 = vdwg.mxu0
      %v2073 = vunpack.c.l.bf16 %v2016
      %v2074 = vunpack.c.h.bf16 %v2016
      %v2075 = vunpack.c.l.bf16 %v2017
      %v2076 = vunpack.c.h.bf16 %v2017
      %v2077 = vunpack.c.l.bf16 %v2018
      %v2078 = vunpack.c.h.bf16 %v2018
      %v2079 = vunpack.c.l.bf16 %v2019
      %v2080 = vunpack.c.h.bf16 %v2019
      %v2085 = vrot.slane %v2031, 1
      %v2086 = vrot.slane %v2044, 1
      %v2087 = vrot.slane %v2057, 1
      %v2088 = vrot.slane %v2070, 1
      %v2089 = vrot.slane %v2031, 2
      %v2090 = vrot.slane %v2044, 2
      %v2091 = vrot.slane %v2057, 2
      %v2092 = vrot.slane %v2070, 2
      %v2101 = vadd.f32 %v2073, %v2085
      %v2102 = vadd.f32 %v2074, %v2086
      %v2103 = vadd.f32 %v2075, %v2087
      %v2104 = vadd.f32 %v2076, %v2088
      %v2105 = vadd.f32 %v2077, %v2089
      %v2106 = vadd.f32 %v2078, %v2090
      %v2107 = vadd.f32 %v2079, %v2091
      %v2108 = vadd.f32 %v2080, %v2092
      %v2109 = vxor.u32 %v2101, 2147483648
      %v2110 = vxor.u32 %v2102, 2147483648
      %v2111 = vxor.u32 %v2103, 2147483648
      %v2112 = vxor.u32 %v2105, 2147483648
      %v2113 = vxor.u32 %v2106, 2147483648
      %v2114 = vxor.u32 %v2107, 2147483648
      %v2115 = vmul.f32 %v2109, 1.442695
      %v2116 = vpow.pop %v2115
      %v2117 = vmul.f32 %v2110, 1.442695
      %v2118 = vpow.pop %v2117
      %v2119 = vmul.f32 %v2111, 1.442695
      %v2120 = vpow.pop %v2119
      %v2121 = vmul.f32 %v2112, 1.442695
      %v2122 = vpow.pop %v2121
      %v2123 = vmul.f32 %v2113, 1.442695
      %v2124 = vpow.pop %v2123
      %v2125 = vmul.f32 %v2114, 1.442695
      %v2126 = vpow.pop %v2125
      %v2127 = vadd.f32 %v2116, 1.0
      %v2128 = vadd.f32 %v2118, 1.0
      %v2129 = vadd.f32 %v2120, 1.0
      %v2130 = vadd.f32 %v2122, 1.0
      %v2131 = vadd.f32 %v2124, 1.0
      %v2132 = vadd.f32 %v2126, 1.0
      %v2133 = vrcp.pop %v2127
      %v2134 = vmul.f32 %v2127, %v2133
      %v2135 = vsub.f32 1.0, %v2134
      %v2136 = vmul.f32 %v2133, %v2135
      %v2137 = vadd.f32 %v2133, %v2136
      %vm2138 = vweird.f32 %v2127
      %vm2139 = vweird.f32 %v2133
      %vm2140 = vmor %vm2138, %vm2139
      %v2141 = vsel %vm2140, %v2133, %v2137
      %v2142 = vand.u32 2147483647, %v2127
      %vm2143 = vcmp.eq.f32.partialorder %v2142, 8.507059e+37
      %v2144 = vand.u32 %v2127, 2147483648
      %v2145 = vor.u32 1.1754944e-38, %v2144
      %v2146 = vsel %vm2143, %v2145, %v2141
      %v2147 = vmul.f32 1.0, %v2146
      %v2148 = vrcp.pop %v2128
      %v2149 = vmul.f32 %v2128, %v2148
      %v2150 = vsub.f32 1.0, %v2149
      %v2151 = vmul.f32 %v2148, %v2150
      %v2152 = vadd.f32 %v2148, %v2151
      %vm2153 = vweird.f32 %v2128
      %vm2154 = vweird.f32 %v2148
      %vm2155 = vmor %vm2153, %vm2154
      %v2156 = vsel %vm2155, %v2148, %v2152
      %v2157 = vand.u32 2147483647, %v2128
      %vm2158 = vcmp.eq.f32.partialorder %v2157, 8.507059e+37
      %v2159 = vand.u32 %v2128, 2147483648
      %v2160 = vor.u32 1.1754944e-38, %v2159
      %v2161 = vsel %vm2158, %v2160, %v2156
      %v2162 = vmul.f32 1.0, %v2161
      %v2163 = vrcp.pop %v2129
      %v2164 = vmul.f32 %v2129, %v2163
      %v2165 = vsub.f32 1.0, %v2164
      %v2166 = vmul.f32 %v2163, %v2165
      %v2167 = vadd.f32 %v2163, %v2166
      %vm2168 = vweird.f32 %v2129
      %vm2169 = vweird.f32 %v2163
      %vm2170 = vmor %vm2168, %vm2169
      %v2171 = vsel %vm2170, %v2163, %v2167
      %v2172 = vand.u32 2147483647, %v2129
      %vm2173 = vcmp.eq.f32.partialorder %v2172, 8.507059e+37
      %v2174 = vand.u32 %v2129, 2147483648
      %v2175 = vor.u32 1.1754944e-38, %v2174
      %v2176 = vsel %vm2173, %v2175, %v2171
      %v2177 = vmul.f32 1.0, %v2176
      %v2178 = vrcp.pop %v2130
      %v2179 = vmul.f32 %v2130, %v2178
      %v2180 = vsub.f32 1.0, %v2179
      %v2181 = vmul.f32 %v2178, %v2180
      %v2182 = vadd.f32 %v2178, %v2181
      %vm2183 = vweird.f32 %v2130
      %vm2184 = vweird.f32 %v2178
      %vm2185 = vmor %vm2183, %vm2184
      %v2186 = vsel %vm2185, %v2178, %v2182
      %v2187 = vand.u32 2147483647, %v2130
      %vm2188 = vcmp.eq.f32.partialorder %v2187, 8.507059e+37
      %v2189 = vand.u32 %v2130, 2147483648
      %v2190 = vor.u32 1.1754944e-38, %v2189
      %v2191 = vsel %vm2188, %v2190, %v2186
      %v2192 = vmul.f32 1.0, %v2191
      %v2193 = vrcp.pop %v2131
      %v2194 = vmul.f32 %v2131, %v2193
      %v2195 = vsub.f32 1.0, %v2194
      %v2196 = vmul.f32 %v2193, %v2195
      %v2197 = vadd.f32 %v2193, %v2196
      %vm2198 = vweird.f32 %v2131
      %vm2199 = vweird.f32 %v2193
      %vm2200 = vmor %vm2198, %vm2199
      %v2201 = vsel %vm2200, %v2193, %v2197
      %v2202 = vand.u32 2147483647, %v2131
      %vm2203 = vcmp.eq.f32.partialorder %v2202, 8.507059e+37
      %v2204 = vand.u32 %v2131, 2147483648
      %v2205 = vor.u32 1.1754944e-38, %v2204
      %v2206 = vsel %vm2203, %v2205, %v2201
      %v2207 = vmul.f32 1.0, %v2206
      %v2208 = vrcp.pop %v2132
      %v2209 = vmul.f32 %v2132, %v2208
      %v2210 = vsub.f32 1.0, %v2209
      %v2211 = vmul.f32 %v2208, %v2210
      %v2212 = vadd.f32 %v2208, %v2211
      %vm2213 = vweird.f32 %v2132
      %vm2214 = vweird.f32 %v2208
      %vm2215 = vmor %vm2213, %vm2214
      %v2216 = vsel %vm2215, %v2208, %v2212
      %v2217 = vand.u32 2147483647, %v2132
      %vm2218 = vcmp.eq.f32.partialorder %v2217, 8.507059e+37
      %v2219 = vand.u32 %v2132, 2147483648
      %v2220 = vor.u32 1.1754944e-38, %v2219
      %v2221 = vsel %vm2218, %v2220, %v2216
      %v2222 = vmul.f32 1.0, %v2221
      %v2223 = vtanh.pop %v2104
      %v2224 = vtanh.pop %v2108
      %v2226 = vrot.slane %v2009, 1
      %v2227 = vrot.slane %v2009, 2
      %v2230 = vmul.f32 %v2162, %v2226
      %v2231 = vmul.f32 %v2207, %v2227
      %v2232 = vmul.f32 %v2147, %v2223
      %v2233 = vmul.f32 %v2192, %v2224
      %v2234 = vadd.f32 %v2230, %v2232
      %v2235 = vadd.f32 %v2231, %v2233
      %v2236 = vtanh.pop %v2234
      %v2237 = vtanh.pop %v2235
      %v2238 = vmul.f32 %v2177, %v2236
      %v2239 = vmul.f32 %v2222, %v2237
      %s2240 = sadd.s32 %s53, 7
      %v2241 = vstv %s2240
      %vm2242 = vcmp.lt.s32.totalorder %v2241, %v71
      %v2243 = vsel %vm2242, 1, 0
      %2244 = vset.pattern.permute.xlu0 0
      %2245 = vperm.xlu0 %2244, %v2243
      %v2246 = vpop.permute.xlu0 %2245
      %vm2247 = vcmp.eq.s32.totalorder %v2246, 1
      %v2250 = vrot.slane %v2238, 7
      %v2251 = vrot.slane %v2239, 6
      %v2252 = vsel %vm495, %v2251, %v2250
      %v2254 = vsel %vm2247, %v2252, %v2002
      %v2257 = vrot.slane %v2234, 7
      %v2258 = vrot.slane %v2235, 6
      %v2259 = vsel %vm495, %v2258, %v2257
      %v2261 = vsel %vm2247, %v2259, %v2009
      %v2262 = vsel %vm2247, %v2252, 0.0
      %v2264 = vrot.slane %v2262, 1
      %2266 = vst [vmem:[#allocation9 + $0x7] sm:$0x1] %v2262
      %2267 = vst [vmem:[#allocation9 + $0xf] sm:$0x1] %v2264
      %2268 = vst [vmem:[#allocation10] sm:$0x3] %v2254
      %2269 = vst [vmem:[#allocation12] sm:$0x3] %v2261
    $region33: #{tpu_custom_call.1} parent=1 // pred_fallthru
      _
    // Predicated region
    $region34: #{tpu_custom_call.1} parent=1 // pred_check
      _
    $region35: #{tpu_custom_call.1} parent=1 // pred_check_branch
      %2271 = sbr.rel (0) target = $region37
    $region36: #{tpu_custom_call.1} parent=1 // pred_region
      %2273 = vsyncadd [#allocation6], 0
      %s2274 = sshll.u32 [#allocation9], 4
      %s2275 = int_to_ptr.vmem [resolvable:$true] %s2274
      %s2276 = sshll.u32 %s4, 4
      %s2277 = int_to_ptr.hbm [resolvable:$true] %s2276
      %2282 = dma.vmem_to_hbm [thread:$0]  %s2275, 256, %s2277, [#allocation6], 128, 128, 8
    $region37: #{tpu_custom_call.1} parent=1 // pred_fallthru
      _
    // Predicated region
    $region38: #{tpu_custom_call.1} parent=1 // pred_check
      _
    $region39: #{tpu_custom_call.1} parent=1 // pred_check_branch
      %2284 = sbr.rel (0) target = $region41
    $region40: #{tpu_custom_call.1} parent=1 // pred_region
      %2286 = vsyncadd [#allocation11], 0
      %s2288 = sshll.u32 [#allocation10], 4
      %s2289 = int_to_ptr.vmem [resolvable:$true] %s2288
      %s2290 = sshll.u32 %s5, 4
      %s2291 = int_to_ptr.hbm [resolvable:$true] %s2290
      %2293 = dma.vmem_to_hbm [thread:$0]  %s2289, 32, %s2291, [#allocation11]
    $region41: #{tpu_custom_call.1} parent=1 // pred_fallthru
      _
    // Predicated region
    $region42: #{tpu_custom_call.1} parent=1 // pred_check
      _
    $region43: #{tpu_custom_call.1} parent=1 // pred_check_branch
      %2295 = sbr.rel (0) target = $region45
    $region44: #{tpu_custom_call.1} parent=1 // pred_region
      %2297 = vsyncadd [#allocation11], 0
      %s2299 = sshll.u32 [#allocation12], 4
      %s2300 = int_to_ptr.vmem [resolvable:$true] %s2299
      %s2301 = sshll.u32 %s6, 4
      %s2302 = int_to_ptr.hbm [resolvable:$true] %s2301
      %2304 = dma.vmem_to_hbm [thread:$0]  %s2300, 32, %s2302, [#allocation11]
    $region45: #{tpu_custom_call.1} parent=1 // pred_fallthru
      _
    // Predicated region
    $region46: #{tpu_custom_call.1} parent=1 // pred_check
      _
    $region47: #{tpu_custom_call.1} parent=1 // pred_check_branch
      %2306 = sbr.rel (0) target = $region49
    $region48: #{tpu_custom_call.1} parent=1 // pred_region
      %2308 = dma.done [#allocation6], 256
    $region49: #{tpu_custom_call.1} parent=1 // pred_fallthru
      _
    // Predicated region
    $region50: #{tpu_custom_call.1} parent=1 // pred_check
      _
    $region51: #{tpu_custom_call.1} parent=1 // pred_check_branch
      %2310 = sbr.rel (0) target = $region53
    $region52: #{tpu_custom_call.1} parent=1 // pred_region
      %2312 = dma.done [#allocation11], 32
    $region53: #{tpu_custom_call.1} parent=1 // pred_fallthru
      _
    // Predicated region
    $region54: #{tpu_custom_call.1} parent=1 // pred_check
      _
    $region55: #{tpu_custom_call.1} parent=1 // pred_check_branch
      %2314 = sbr.rel (0) target = $region57
    $region56: #{tpu_custom_call.1} parent=1 // pred_region
      %2316 = dma.done [#allocation11], 32
    $region57: #{tpu_custom_call.1} parent=1 // pred_fallthru
      _
    %2317 = vsyncpa [#allocation5], 1
    %2318 = vsyncpa [#allocation8], 1
    %2319 = vsyncpa [#allocation6], 1
    %2320 = vsyncpa [#allocation11], 1

</llo_original>
